<compile_context>
chip_gen: v5e
topology: v5e:2x2
jax: 0.10.0
libtpu: 0.0.40
codegen_flags: <defaults>
</compile_context>

<pallas_src>
import jax
import jax.numpy as jnp
from jax.experimental import pallas as pl
from jax.experimental.pallas import tpu as pltpu


def _vmem():
    return pl.BlockSpec(memory_space=pltpu.MemorySpace.VMEM)


# --------------------------- fused GNN stack kernel ---------------------------

def gnn_stack(node_feat, mats_bf16, inv_norms, conv_w, conv_b, latent_dim):
    """All 2*len(latent_dim) graph-conv levels in a single pallas_call.

    mats_bf16: (sp_n2m, sp_m2n, sp_n_2m_, sp_m_2n_, sp_m2m_, sp_m_2m), bf16 0/1 (exact).
    inv_norms: (1/node_hdegs, 1/node_hdegs_, 1/hyperedge_sizes, 1/hyperedge_sizes_), f32.
    Returns the concatenated (n, sum(latent_dim)) message layer (f32); concatenation is
    done IN-KERNEL via static column-slice stores into one lane-dense output.
    """
    sp_n2m, sp_m2n, sp_n_2m_, sp_m_2n_, sp_m2m_, sp_m_2m = mats_bf16
    inv_nd, inv_nd_, inv_hs, inv_hs_ = inv_norms
    num_levels = 2 * len(latent_dim)
    n = node_feat.shape[0]
    total = sum(latent_dim)

    def kernel(*refs):
        (x_ref, r_m2n, r_m_2m, r_n_2m_, r_m_2n_, r_m2m_, r_n2m,
         r_ihs, r_ihs_, r_ind, r_ind_) = refs[:11]
        w_refs = refs[11:11 + num_levels]
        b_refs = refs[11 + num_levels:11 + 2 * num_levels]
        o_ref = refs[-1]

        # Hoisted loads: the level loop below is fully unrolled at trace time and JAX
        # does not CSE these loads/broadcasts, so read each operand exactly once.
        a_m2n, a_m_2m, a_n_2m_ = r_m2n[...], r_m_2m[...], r_n_2m_[...]
        a_m_2n_, a_m2m_, a_n2m = r_m_2n_[...], r_m2m_[...], r_n2m[...]
        ihs, ihs_, ind, ind_ = r_ihs[...], r_ihs_[...], r_ind[...], r_ind_[...]

        def spmm(a_bf16, x_f32):
            # bf16 x bf16 MXU matmul with f32 accumulation.
            return jnp.dot(a_bf16, x_f32.astype(jnp.bfloat16),
                           preferred_element_type=jnp.float32)

        def linear(x_f32, lv):
            return jnp.dot(x_f32.astype(jnp.bfloat16), w_refs[lv][...],
                           preferred_element_type=jnp.float32) + b_refs[lv][...]

        cur = x_ref[...]                          # f32 activations throughout
        lv, col = 0, 0
        for _ in range(len(latent_dim)):          # fully unrolled at trace time
            cur = spmm(a_m2n, cur) * ihs
            cur = spmm(a_m_2m, cur) * ihs_
            cur_ = jnp.tanh(linear(spmm(a_n_2m_, cur), lv) * ind_)
            lv += 1
            cur = spmm(a_m_2n_, cur_) * ihs_
            cur = spmm(a_m2m_, cur) * ihs
            cur = jnp.tanh(linear(spmm(a_n2m, cur), lv) * ind)
            lv += 1
            w = cur.shape[1]
            o_ref[:, col:col + w] = cur           # in-kernel concat (static lane slice)
            col += w

    ins = [node_feat, sp_m2n, sp_m_2m, sp_n_2m_, sp_m_2n_, sp_m2m_, sp_n2m,
           inv_hs, inv_hs_, inv_nd, inv_nd_] + list(conv_w) + list(conv_b)
    # TODO(synk): for non-toy workloads add a per-graph grid over the block-diagonal
    # structure (PrefetchScalarGridSpec with scalar-prefetched row/col offsets) marked
    # "parallel" — needed both to use v7x's second TensorCore and to stay inside v7x's
    # 64 MiB VMEM; at these toy sizes full VMEM residency is optimal.
    return pl.pallas_call(
        kernel,
        out_shape=jax.ShapeDtypeStruct((n, total), jnp.float32),
        in_specs=[_vmem()] * len(ins),
        out_specs=_vmem(),
        compiler_params=pltpu.CompilerParams(vmem_limit_bytes=48 * 1024 * 1024),
    )(*ins)


# --------------------- fused conv1d head + dense output layer -------------------

def conv_dense_head(sp_pairs, w1_bf16, b1, w2_bf16, b2, w_out_bf16, b_out, kw2):
    """Conv1d(1->C1, kernel=stride=D) + ReLU + MaxPool1d(2,2) + Conv1d(C1->C2, kw2, 1)
    + ReLU + Linear(dense_dim -> out_dim) + ReLU, all in one pallas_call.

    sp_pairs: (B, P, 2*D) — row p holds sorted nodes (2p, 2p+1) side by side (pure
    metadata reshape on the host), so MaxPool1d(2,2) is a plain jnp.maximum in-kernel.
    """
    B, P, D2 = sp_pairs.shape
    D = D2 // 2
    C1 = w1_bf16.shape[1]
    C2 = w2_bf16.shape[1]
    out_dim = w_out_bf16.shape[1]
    L = P - kw2 + 1

    def kernel(x_ref, w1_ref, b1_ref, w2_ref, b2_ref, wo_ref, bo_ref, o_ref):
        w1 = w1_ref[...]
        b1v = b1_ref[...]
        # Conv1d with kernel==stride==D is a per-node Linear(D -> C1).
        xe = x_ref[0, :, 0:D].astype(jnp.bfloat16)        # even nodes  (P, D)
        xo = x_ref[0, :, D:2 * D].astype(jnp.bfloat16)    # odd nodes   (P, D)
        ye = jnp.maximum(jnp.dot(xe, w1, preferred_element_type=jnp.float32) + b1v, 0.0)
        yo = jnp.maximum(jnp.dot(xo, w1, preferred_element_type=jnp.float32) + b1v, 0.0)
        yp = jnp.maximum(ye, yo)                          # MaxPool1d(2,2) -> (P, C1)

        # Conv1d(C1->C2, kw2, stride 1): kw2 accumulated MXU matmuls (no im2col concat).
        w2 = w2_ref[...]                                  # (kw2*C1, C2)
        acc2 = jnp.dot(yp[0:L, :].astype(jnp.bfloat16), w2[0:C1, :],
                       preferred_element_type=jnp.float32)
        for t in range(1, kw2):
            acc2 = acc2 + jnp.dot(yp[t:t + L, :].astype(jnp.bfloat16),
                                  w2[t * C1:(t + 1) * C1, :],
                                  preferred_element_type=jnp.float32)
        y2 = jnp.maximum(acc2 + b2_ref[...], 0.0)         # (L, C2)

        # Dense output layer fused in: out[o] = sum_{l,c} y2[l,c] * Wout[l*C2 + c, o],
        # done as L tiny matmuls to avoid an in-kernel (L,C2)->(1,L*C2) relayout
        # (MXU has plenty of slack at these sizes).
        wo = wo_ref[...]                                  # (L*C2, out_dim)
        acc3 = jnp.dot(y2[0:1, :].astype(jnp.bfloat16), wo[0:C2, :],
                       preferred_element_type=jnp.float32)
        for l in range(1, L):
            acc3 = acc3 + jnp.dot(y2[l:l + 1, :].astype(jnp.bfloat16),
                                  wo[l * C2:(l + 1) * C2, :],
                                  preferred_element_type=jnp.float32)
        o_ref[0] = jnp.maximum(acc3 + bo_ref[...], 0.0)   # (1, out_dim)

    out = pl.pallas_call(
        kernel,
        out_shape=jax.ShapeDtypeStruct((B, 1, out_dim), jnp.float32),
        grid=(B,),
        in_specs=[
            pl.BlockSpec((1, P, D2), lambda b: (b, 0, 0)),
            pl.BlockSpec((D, C1), lambda b: (0, 0)),
            pl.BlockSpec((1, C1), lambda b: (0, 0)),
            pl.BlockSpec((kw2 * C1, C2), lambda b: (0, 0)),
            pl.BlockSpec((1, C2), lambda b: (0, 0)),
            pl.BlockSpec((L * C2, out_dim), lambda b: (0, 0)),
            pl.BlockSpec((1, out_dim), lambda b: (0, 0)),
        ],
        out_specs=pl.BlockSpec((1, 1, out_dim), lambda b: (b, 0, 0)),
        compiler_params=pltpu.CompilerParams(dimension_semantics=("parallel",)),
    )(sp_pairs, w1_bf16, b1, w2_bf16, b2, w_out_bf16, b_out)
    return out.reshape(B, out_dim)


# ----------------------------- parameter preparation ---------------------------

def prepare_kernel_params(params, cfg):
    """Cast MXU operands to bf16 and fold the Conv1d / flatten layouts into the weights."""
    c1, c2 = cfg["conv1d_channels"]
    kw2 = cfg["conv1d_kw2"]
    k = cfg["k"]
    out_dim = cfg["output_dim"]
    P = (k - 2) // 2 + 1
    L = P - kw2 + 1
    # Conv1d(C1->C2, kw2) weight (kw2, C1, C2) -> stacked (kw2*C1, C2) layout.
    w2 = params["w2"].reshape(kw2 * c1, c2)
    # Dense weight rows are in PyTorch flatten order (c*L + l); permute once to the
    # kernel's (l*C2 + c) order so the fused head never transposes at runtime.
    w_out = jnp.transpose(params["w_out"].reshape(c2, L, out_dim), (1, 0, 2)).reshape(
        L * c2, out_dim)
    return {
        "conv_w": [w.astype(jnp.bfloat16) for w in params["conv_w"]],
        "conv_b": list(params["conv_b"]),
        "w1": params["w1"].astype(jnp.bfloat16), "b1": params["b1"],
        "w2": w2.astype(jnp.bfloat16), "b2": params["b2"],
        "w_out": w_out.astype(jnp.bfloat16), "b_out": params["b_out"],
    }


# ------------------------------- DGCNN forward ---------------------------------

def dgcnn_forward(params, node_feat, mats, norms, graph_node_counts, cfg):
    latent_dim = cfg["latent_dim"]
    k = cfg["k"]
    kw2 = cfg["conv1d_kw2"]
    total = sum(latent_dim)

    kp = prepare_kernel_params(params, cfg)
    mats_bf16 = tuple(m.astype(jnp.bfloat16) for m in mats)   # 0/1 values: exact in bf16
    inv_norms = tuple(1.0 / v for v in norms)                 # fold divide -> multiply

    # ---- fused graph-convolution stack (single Pallas kernel, VMEM-resident) ----
    cur = gnn_stack(node_feat, mats_bf16, inv_norms, kp["conv_w"], kp["conv_b"], latent_dim)

    # ---- sortpooling layer (batched top_k + one gather; static per-graph sizes) ----
    # TODO(synk): per-graph variable-length top-k + gather has no clean Pallas
    # equivalent; done in plain JAX, but as ONE batched lax.top_k over a padded
    # (B, max_n) matrix and a single gather (no per-graph Python loop of XLA ops).
    B = len(graph_node_counts)
    N = cur.shape[0]
    max_n = max(graph_node_counts)
    offs = [0]
    for c in graph_node_counts[:-1]:
        offs.append(offs[-1] + c)
    pad_idx = jnp.array(
        [[offs[i] + j if j < graph_node_counts[i] else N for j in range(max_n)]
         for i in range(B)], jnp.int32)                         # N -> zero-pad row
    sortc = jnp.concatenate([cur[:, -1], jnp.full((1,), -jnp.inf, cur.dtype)])
    cur_padded = jnp.concatenate([cur, jnp.zeros((1, total), cur.dtype)], axis=0)
    topk_len = min(k, max_n)
    _, top_pos = jax.lax.top_k(sortc[pad_idx], topk_len)        # descending, like torch.topk
    sel = jnp.take_along_axis(pad_idx, top_pos, axis=1)         # padded slots -> row N
    if topk_len < k:
        sel = jnp.concatenate(
            [sel, jnp.full((B, k - topk_len), N, jnp.int32)], axis=1)
    sp_batch = cur_padded[sel]                                  # (B, k, total)

    # MaxPool1d(2,2) pairs (2p, 2p+1) packed side by side: pure metadata reshape.
    P = (k - 2) // 2 + 1
    sp_pairs = sp_batch[:, :2 * P, :].reshape(B, P, 2 * total)

    # ---- fused conv1d head + dense output layer (Pallas, batch grid "parallel") ----
    return conv_dense_head(sp_pairs, kp["w1"], kp["b1"], kp["w2"], kp["b2"],
                           kp["w_out"], kp["b_out"], kw2)


# ----------------------------- parameter init -----------------------------------

def init_params(key, cfg):
    nf = cfg["num_node_feats"]
    latent_dim = cfg["latent_dim"]
    total = sum(latent_dim)
    c1, c2 = cfg["conv1d_channels"]
    kw2 = cfg["conv1d_kw2"]
    k = cfg["k"]
    out_dim = cfg["output_dim"]
    dense_dim = (((k - 2) // 2 + 1) - kw2 + 1) * c2

    # conv_params: Linear(nf, ld0); then (Linear(ld[i-1], ld[i-1]), Linear(ld[i-1], ld[i]));
    # then Linear(ld[-1], ld[-1])
    dims = [(nf, latent_dim[0])]
    for i in range(1, len(latent_dim)):
        dims.append((latent_dim[i - 1], latent_dim[i - 1]))
        dims.append((latent_dim[i - 1], latent_dim[i]))
    dims.append((latent_dim[-1], latent_dim[-1]))

    keys = jax.random.split(key, 2 * len(dims) + 6)
    conv_w, conv_b = [], []
    for j, (din, dout) in enumerate(dims):
        conv_w.append(0.1 * jax.random.normal(keys[2 * j], (din, dout), jnp.float32))
        conv_b.append(0.1 * jax.random.normal(keys[2 * j + 1], (1, dout), jnp.float32))
    i0 = 2 * len(dims)
    return {
        "conv_w": conv_w, "conv_b": conv_b,
        # Conv1d(1, c1, kernel=stride=total) stored as (total, c1)
        "w1": 0.1 * jax.random.normal(keys[i0 + 0], (total, c1), jnp.float32),
        "b1": 0.1 * jax.random.normal(keys[i0 + 1], (1, c1), jnp.float32),
        # Conv1d(c1, c2, kw2, 1) stored as (kw2, c1, c2)
        "w2": 0.1 * jax.random.normal(keys[i0 + 2], (kw2, c1, c2), jnp.float32),
        "b2": 0.1 * jax.random.normal(keys[i0 + 3], (1, c2), jnp.float32),
        # out_params: Linear(dense_dim, output_dim) stored as (dense_dim, out_dim)
        "w_out": 0.1 * jax.random.normal(keys[i0 + 4], (dense_dim, out_dim), jnp.float32),
        "b_out": 0.1 * jax.random.normal(keys[i0 + 5], (1, out_dim), jnp.float32),
    }


# ----------------------------------- main ----------------------------------------

if __name__ == "__main__":
    cfg = dict(output_dim=8, num_node_feats=4, num_edge_feats=0,
               latent_dim=[32, 32, 32, 1], k=30,
               conv1d_channels=[16, 32], conv1d_kw2=5)

    key = jax.random.PRNGKey(0)
    k_param, k_feat, k_s0, k_s1, k_t0, k_t1, k_b0, k_b1 = jax.random.split(key, 8)

    # two small synthetic bi-hypergraphs (HGNNLIB.PrepareSparseMatrices replaced by
    # deterministic dense block-diagonal incidence matrices)
    sizes = [dict(n=6, m=4, n_=5, m_=3), dict(n=7, m=5, n_=4, m_=4)]

    def bern(kk, shape):
        return jax.random.bernoulli(kk, 0.5, shape).astype(jnp.float32)

    S_blocks = [bern(k_s0, (sizes[0]["n"], sizes[0]["m"])),
                bern(k_s1, (sizes[1]["n"], sizes[1]["m"]))]
    S__blocks = [bern(k_t0, (sizes[0]["n_"], sizes[0]["m_"])),
                 bern(k_t1, (sizes[1]["n_"], sizes[1]["m_"]))]
    B_blocks = [bern(k_b0, (sizes[0]["m"], sizes[0]["m_"])),
                bern(k_b1, (sizes[1]["m"], sizes[1]["m_"]))]

    def block_diag(blocks):
        r = sum(b.shape[0] for b in blocks)
        c = sum(b.shape[1] for b in blocks)
        out = jnp.zeros((r, c), jnp.float32)
        ro = co = 0
        for b in blocks:
            out = out.at[ro:ro + b.shape[0], co:co + b.shape[1]].set(b)
            ro += b.shape[0]
            co += b.shape[1]
        return out

    S = block_diag(S_blocks)      # n x m   (sp_n2m)
    S_ = block_diag(S__blocks)    # n_ x m_ (sp_n_2m_)
    Bm = block_diag(B_blocks)     # m x m_  (sp_m2m_)

    mats = (S, S.T, S_, S_.T, Bm, Bm.T)
    norms = (S.sum(axis=1, keepdims=True) + 1.0,    # node_hdegs       (n, 1)
             S_.sum(axis=1, keepdims=True) + 1.0,   # node_hdegs_      (n_, 1)
             S.sum(axis=0)[:, None] + 1.0,          # hyperedge_sizes  (m, 1)
             S_.sum(axis=0)[:, None] + 1.0)         # hyperedge_sizes_ (m_, 1)

    N = S.shape[0]
    node_feat = jax.random.normal(k_feat, (N, cfg["num_node_feats"]), jnp.float32)

    params = init_params(k_param, cfg)
    graph_node_counts = [s["n"] for s in sizes]

    out = dgcnn_forward(params, node_feat, mats, norms, graph_node_counts, cfg)
    out = jax.block_until_ready(out)
    assert out.shape == (len(sizes), cfg["output_dim"])
    assert bool(jnp.all(jnp.isfinite(out)))
    print("KERNEL_OK")
</pallas_src>

<mosaic_0001>
module attributes {stable_mosaic.version = 11 : i64} {
  func.func @kernel(%arg0: memref<13x4xf32, #tpu.memory_space<vmem>>, %arg1: memref<9x13xbf16, #tpu.memory_space<vmem>>, %arg2: memref<7x9xbf16, #tpu.memory_space<vmem>>, %arg3: memref<9x7xbf16, #tpu.memory_space<vmem>>, %arg4: memref<7x9xbf16, #tpu.memory_space<vmem>>, %arg5: memref<9x7xbf16, #tpu.memory_space<vmem>>, %arg6: memref<13x9xbf16, #tpu.memory_space<vmem>>, %arg7: memref<9x1xf32, #tpu.memory_space<vmem>>, %arg8: memref<7x1xf32, #tpu.memory_space<vmem>>, %arg9: memref<13x1xf32, #tpu.memory_space<vmem>>, %arg10: memref<9x1xf32, #tpu.memory_space<vmem>>, %arg11: memref<4x32xbf16, #tpu.memory_space<vmem>>, %arg12: memref<32x32xbf16, #tpu.memory_space<vmem>>, %arg13: memref<32x32xbf16, #tpu.memory_space<vmem>>, %arg14: memref<32x32xbf16, #tpu.memory_space<vmem>>, %arg15: memref<32x32xbf16, #tpu.memory_space<vmem>>, %arg16: memref<32x32xbf16, #tpu.memory_space<vmem>>, %arg17: memref<32x1xbf16, #tpu.memory_space<vmem>>, %arg18: memref<1x1xbf16, #tpu.memory_space<vmem>>, %arg19: memref<1x32xf32, #tpu.memory_space<vmem>>, %arg20: memref<1x32xf32, #tpu.memory_space<vmem>>, %arg21: memref<1x32xf32, #tpu.memory_space<vmem>>, %arg22: memref<1x32xf32, #tpu.memory_space<vmem>>, %arg23: memref<1x32xf32, #tpu.memory_space<vmem>>, %arg24: memref<1x32xf32, #tpu.memory_space<vmem>>, %arg25: memref<1x1xf32, #tpu.memory_space<vmem>>, %arg26: memref<1x1xf32, #tpu.memory_space<vmem>>, %arg27: memref<13x97xf32, #tpu.memory_space<vmem>>) attributes {dimension_semantics = [], scalar_prefetch = 0 : i64, scratch_operands = 0 : i64, tpu.core_type = #tpu.core_type<tc>} {
    %c0 = arith.constant 0 : index
    %c0_0 = arith.constant 0 : index
    %0 = vector.load %arg1[%c0, %c0_0] : memref<9x13xbf16, #tpu.memory_space<vmem>>, vector<9x13xbf16>
    %c0_1 = arith.constant 0 : index
    %c0_2 = arith.constant 0 : index
    %1 = vector.load %arg2[%c0_1, %c0_2] : memref<7x9xbf16, #tpu.memory_space<vmem>>, vector<7x9xbf16>
    %c0_3 = arith.constant 0 : index
    %c0_4 = arith.constant 0 : index
    %2 = vector.load %arg3[%c0_3, %c0_4] : memref<9x7xbf16, #tpu.memory_space<vmem>>, vector<9x7xbf16>
    %c0_5 = arith.constant 0 : index
    %c0_6 = arith.constant 0 : index
    %3 = vector.load %arg4[%c0_5, %c0_6] : memref<7x9xbf16, #tpu.memory_space<vmem>>, vector<7x9xbf16>
    %c0_7 = arith.constant 0 : index
    %c0_8 = arith.constant 0 : index
    %4 = vector.load %arg5[%c0_7, %c0_8] : memref<9x7xbf16, #tpu.memory_space<vmem>>, vector<9x7xbf16>
    %c0_9 = arith.constant 0 : index
    %c0_10 = arith.constant 0 : index
    %5 = vector.load %arg6[%c0_9, %c0_10] : memref<13x9xbf16, #tpu.memory_space<vmem>>, vector<13x9xbf16>
    %c0_11 = arith.constant 0 : index
    %c0_12 = arith.constant 0 : index
    %6 = vector.load %arg7[%c0_11, %c0_12] : memref<9x1xf32, #tpu.memory_space<vmem>>, vector<9x1xf32>
    %c0_13 = arith.constant 0 : index
    %c0_14 = arith.constant 0 : index
    %7 = vector.load %arg8[%c0_13, %c0_14] : memref<7x1xf32, #tpu.memory_space<vmem>>, vector<7x1xf32>
    %c0_15 = arith.constant 0 : index
    %c0_16 = arith.constant 0 : index
    %8 = vector.load %arg9[%c0_15, %c0_16] : memref<13x1xf32, #tpu.memory_space<vmem>>, vector<13x1xf32>
    %c0_17 = arith.constant 0 : index
    %c0_18 = arith.constant 0 : index
    %9 = vector.load %arg10[%c0_17, %c0_18] : memref<9x1xf32, #tpu.memory_space<vmem>>, vector<9x1xf32>
    %c0_19 = arith.constant 0 : index
    %c0_20 = arith.constant 0 : index
    %10 = vector.load %arg0[%c0_19, %c0_20] : memref<13x4xf32, #tpu.memory_space<vmem>>, vector<13x4xf32>
    %11 = arith.truncf %10 : vector<13x4xf32> to vector<13x4xbf16>
    %cst = arith.constant dense<0.000000e+00> : vector<9x4xf32>
    %12 = tpu.matmul %0, %11, %cst {dimension_numbers = #tpu.dot_dimension_numbers<[1], [0], [0], [1], [0, 0, 1, 1], [], []>} : vector<9x13xbf16>, vector<13x4xbf16>, vector<9x4xf32> -> vector<9x4xf32>
    %13 = vector.broadcast %6 : vector<9x1xf32> to vector<9x4xf32>
    %14 = arith.mulf %12, %13 : vector<9x4xf32>
    %15 = arith.truncf %14 : vector<9x4xf32> to vector<9x4xbf16>
    %cst_21 = arith.constant dense<0.000000e+00> : vector<7x4xf32>
    %16 = tpu.matmul %1, %15, %cst_21 {dimension_numbers = #tpu.dot_dimension_numbers<[1], [0], [0], [1], [0, 0, 1, 1], [], []>} : vector<7x9xbf16>, vector<9x4xbf16>, vector<7x4xf32> -> vector<7x4xf32>
    %17 = vector.broadcast %7 : vector<7x1xf32> to vector<7x4xf32>
    %18 = arith.mulf %16, %17 : vector<7x4xf32>
    %19 = arith.truncf %18 : vector<7x4xf32> to vector<7x4xbf16>
    %cst_22 = arith.constant dense<0.000000e+00> : vector<9x4xf32>
    %20 = tpu.matmul %2, %19, %cst_22 {dimension_numbers = #tpu.dot_dimension_numbers<[1], [0], [0], [1], [0, 0, 1, 1], [], []>} : vector<9x7xbf16>, vector<7x4xbf16>, vector<9x4xf32> -> vector<9x4xf32>
    %21 = arith.truncf %20 : vector<9x4xf32> to vector<9x4xbf16>
    %c0_23 = arith.constant 0 : index
    %c0_24 = arith.constant 0 : index
    %22 = vector.load %arg11[%c0_23, %c0_24] : memref<4x32xbf16, #tpu.memory_space<vmem>>, vector<4x32xbf16>
    %cst_25 = arith.constant dense<0.000000e+00> : vector<9x32xf32>
    %23 = tpu.matmul %21, %22, %cst_25 {dimension_numbers = #tpu.dot_dimension_numbers<[1], [0], [0], [1], [0, 0, 1, 1], [], []>} : vector<9x4xbf16>, vector<4x32xbf16>, vector<9x32xf32> -> vector<9x32xf32>
    %c0_26 = arith.constant 0 : index
    %c0_27 = arith.constant 0 : index
    %24 = vector.load %arg19[%c0_26, %c0_27] : memref<1x32xf32, #tpu.memory_space<vmem>>, vector<1x32xf32>
    %25 = vector.broadcast %24 : vector<1x32xf32> to vector<9x32xf32>
    %26 = arith.addf %23, %25 : vector<9x32xf32>
    %27 = vector.broadcast %9 : vector<9x1xf32> to vector<9x32xf32>
    %28 = arith.mulf %26, %27 : vector<9x32xf32>
    %29 = math.tanh %28 : vector<9x32xf32>
    %30 = arith.truncf %29 : vector<9x32xf32> to vector<9x32xbf16>
    %cst_28 = arith.constant dense<0.000000e+00> : vector<7x32xf32>
    %31 = tpu.matmul %3, %30, %cst_28 {dimension_numbers = #tpu.dot_dimension_numbers<[1], [0], [0], [1], [0, 0, 1, 1], [], []>} : vector<7x9xbf16>, vector<9x32xbf16>, vector<7x32xf32> -> vector<7x32xf32>
    %32 = vector.broadcast %7 : vector<7x1xf32> to vector<7x32xf32>
    %33 = arith.mulf %31, %32 : vector<7x32xf32>
    %34 = arith.truncf %33 : vector<7x32xf32> to vector<7x32xbf16>
    %cst_29 = arith.constant dense<0.000000e+00> : vector<9x32xf32>
    %35 = tpu.matmul %4, %34, %cst_29 {dimension_numbers = #tpu.dot_dimension_numbers<[1], [0], [0], [1], [0, 0, 1, 1], [], []>} : vector<9x7xbf16>, vector<7x32xbf16>, vector<9x32xf32> -> vector<9x32xf32>
    %36 = vector.broadcast %6 : vector<9x1xf32> to vector<9x32xf32>
    %37 = arith.mulf %35, %36 : vector<9x32xf32>
    %38 = arith.truncf %37 : vector<9x32xf32> to vector<9x32xbf16>
    %cst_30 = arith.constant dense<0.000000e+00> : vector<13x32xf32>
    %39 = tpu.matmul %5, %38, %cst_30 {dimension_numbers = #tpu.dot_dimension_numbers<[1], [0], [0], [1], [0, 0, 1, 1], [], []>} : vector<13x9xbf16>, vector<9x32xbf16>, vector<13x32xf32> -> vector<13x32xf32>
    %40 = arith.truncf %39 : vector<13x32xf32> to vector<13x32xbf16>
    %c0_31 = arith.constant 0 : index
    %c0_32 = arith.constant 0 : index
    %41 = vector.load %arg12[%c0_31, %c0_32] : memref<32x32xbf16, #tpu.memory_space<vmem>>, vector<32x32xbf16>
    %cst_33 = arith.constant dense<0.000000e+00> : vector<13x32xf32>
    %42 = tpu.matmul %40, %41, %cst_33 {dimension_numbers = #tpu.dot_dimension_numbers<[1], [0], [0], [1], [0, 0, 1, 1], [], []>} : vector<13x32xbf16>, vector<32x32xbf16>, vector<13x32xf32> -> vector<13x32xf32>
    %c0_34 = arith.constant 0 : index
    %c0_35 = arith.constant 0 : index
    %43 = vector.load %arg20[%c0_34, %c0_35] : memref<1x32xf32, #tpu.memory_space<vmem>>, vector<1x32xf32>
    %44 = vector.broadcast %43 : vector<1x32xf32> to vector<13x32xf32>
    %45 = arith.addf %42, %44 : vector<13x32xf32>
    %46 = vector.broadcast %8 : vector<13x1xf32> to vector<13x32xf32>
    %47 = arith.mulf %45, %46 : vector<13x32xf32>
    %48 = math.tanh %47 : vector<13x32xf32>
    %c0_36 = arith.constant 0 : index
    %c0_37 = arith.constant 0 : index
    %49 = vector.load %arg27[%c0_36, %c0_37] : memref<13x97xf32, #tpu.memory_space<vmem>>, vector<13x32xf32>
    tpu.vector_store %arg27[%c0_36, %c0_37], %48 {strides = array<i32>} : memref<13x97xf32, #tpu.memory_space<vmem>>, vector<13x32xf32>,
    %50 = arith.truncf %48 : vector<13x32xf32> to vector<13x32xbf16>
    %cst_38 = arith.constant dense<0.000000e+00> : vector<9x32xf32>
    %51 = tpu.matmul %0, %50, %cst_38 {dimension_numbers = #tpu.dot_dimension_numbers<[1], [0], [0], [1], [0, 0, 1, 1], [], []>} : vector<9x13xbf16>, vector<13x32xbf16>, vector<9x32xf32> -> vector<9x32xf32>
    %52 = vector.broadcast %6 : vector<9x1xf32> to vector<9x32xf32>
    %53 = arith.mulf %51, %52 : vector<9x32xf32>
    %54 = arith.truncf %53 : vector<9x32xf32> to vector<9x32xbf16>
    %cst_39 = arith.constant dense<0.000000e+00> : vector<7x32xf32>
    %55 = tpu.matmul %1, %54, %cst_39 {dimension_numbers = #tpu.dot_dimension_numbers<[1], [0], [0], [1], [0, 0, 1, 1], [], []>} : vector<7x9xbf16>, vector<9x32xbf16>, vector<7x32xf32> -> vector<7x32xf32>
    %56 = vector.broadcast %7 : vector<7x1xf32> to vector<7x32xf32>
    %57 = arith.mulf %55, %56 : vector<7x32xf32>
    %58 = arith.truncf %57 : vector<7x32xf32> to vector<7x32xbf16>
    %cst_40 = arith.constant dense<0.000000e+00> : vector<9x32xf32>
    %59 = tpu.matmul %2, %58, %cst_40 {dimension_numbers = #tpu.dot_dimension_numbers<[1], [0], [0], [1], [0, 0, 1, 1], [], []>} : vector<9x7xbf16>, vector<7x32xbf16>, vector<9x32xf32> -> vector<9x32xf32>
    %60 = arith.truncf %59 : vector<9x32xf32> to vector<9x32xbf16>
    %c0_41 = arith.constant 0 : index
    %c0_42 = arith.constant 0 : index
    %61 = vector.load %arg13[%c0_41, %c0_42] : memref<32x32xbf16, #tpu.memory_space<vmem>>, vector<32x32xbf16>
    %cst_43 = arith.constant dense<0.000000e+00> : vector<9x32xf32>
    %62 = tpu.matmul %60, %61, %cst_43 {dimension_numbers = #tpu.dot_dimension_numbers<[1], [0], [0], [1], [0, 0, 1, 1], [], []>} : vector<9x32xbf16>, vector<32x32xbf16>, vector<9x32xf32> -> vector<9x32xf32>
    %c0_44 = arith.constant 0 : index
    %c0_45 = arith.constant 0 : index
    %63 = vector.load %arg21[%c0_44, %c0_45] : memref<1x32xf32, #tpu.memory_space<vmem>>, vector<1x32xf32>
    %64 = vector.broadcast %63 : vector<1x32xf32> to vector<9x32xf32>
    %65 = arith.addf %62, %64 : vector<9x32xf32>
    %66 = vector.broadcast %9 : vector<9x1xf32> to vector<9x32xf32>
    %67 = arith.mulf %65, %66 : vector<9x32xf32>
    %68 = math.tanh %67 : vector<9x32xf32>
    %69 = arith.truncf %68 : vector<9x32xf32> to vector<9x32xbf16>
    %cst_46 = arith.constant dense<0.000000e+00> : vector<7x32xf32>
    %70 = tpu.matmul %3, %69, %cst_46 {dimension_numbers = #tpu.dot_dimension_numbers<[1], [0], [0], [1], [0, 0, 1, 1], [], []>} : vector<7x9xbf16>, vector<9x32xbf16>, vector<7x32xf32> -> vector<7x32xf32>
    %71 = vector.broadcast %7 : vector<7x1xf32> to vector<7x32xf32>
    %72 = arith.mulf %70, %71 : vector<7x32xf32>
    %73 = arith.truncf %72 : vector<7x32xf32> to vector<7x32xbf16>
    %cst_47 = arith.constant dense<0.000000e+00> : vector<9x32xf32>
    %74 = tpu.matmul %4, %73, %cst_47 {dimension_numbers = #tpu.dot_dimension_numbers<[1], [0], [0], [1], [0, 0, 1, 1], [], []>} : vector<9x7xbf16>, vector<7x32xbf16>, vector<9x32xf32> -> vector<9x32xf32>
    %75 = vector.broadcast %6 : vector<9x1xf32> to vector<9x32xf32>
    %76 = arith.mulf %74, %75 : vector<9x32xf32>
    %77 = arith.truncf %76 : vector<9x32xf32> to vector<9x32xbf16>
    %cst_48 = arith.constant dense<0.000000e+00> : vector<13x32xf32>
    %78 = tpu.matmul %5, %77, %cst_48 {dimension_numbers = #tpu.dot_dimension_numbers<[1], [0], [0], [1], [0, 0, 1, 1], [], []>} : vector<13x9xbf16>, vector<9x32xbf16>, vector<13x32xf32> -> vector<13x32xf32>
    %79 = arith.truncf %78 : vector<13x32xf32> to vector<13x32xbf16>
    %c0_49 = arith.constant 0 : index
    %c0_50 = arith.constant 0 : index
    %80 = vector.load %arg14[%c0_49, %c0_50] : memref<32x32xbf16, #tpu.memory_space<vmem>>, vector<32x32xbf16>
    %cst_51 = arith.constant dense<0.000000e+00> : vector<13x32xf32>
    %81 = tpu.matmul %79, %80, %cst_51 {dimension_numbers = #tpu.dot_dimension_numbers<[1], [0], [0], [1], [0, 0, 1, 1], [], []>} : vector<13x32xbf16>, vector<32x32xbf16>, vector<13x32xf32> -> vector<13x32xf32>
    %c0_52 = arith.constant 0 : index
    %c0_53 = arith.constant 0 : index
    %82 = vector.load %arg22[%c0_52, %c0_53] : memref<1x32xf32, #tpu.memory_space<vmem>>, vector<1x32xf32>
    %83 = vector.broadcast %82 : vector<1x32xf32> to vector<13x32xf32>
    %84 = arith.addf %81, %83 : vector<13x32xf32>
    %85 = vector.broadcast %8 : vector<13x1xf32> to vector<13x32xf32>
    %86 = arith.mulf %84, %85 : vector<13x32xf32>
    %87 = math.tanh %86 : vector<13x32xf32>
    %c0_54 = arith.constant 0 : index
    %c32 = arith.constant 32 : index
    %88 = vector.load %arg27[%c0_54, %c32] : memref<13x97xf32, #tpu.memory_space<vmem>>, vector<13x32xf32>
    tpu.vector_store %arg27[%c0_54, %c32], %87 {strides = array<i32>} : memref<13x97xf32, #tpu.memory_space<vmem>>, vector<13x32xf32>,
    %89 = arith.truncf %87 : vector<13x32xf32> to vector<13x32xbf16>
    %cst_55 = arith.constant dense<0.000000e+00> : vector<9x32xf32>
    %90 = tpu.matmul %0, %89, %cst_55 {dimension_numbers = #tpu.dot_dimension_numbers<[1], [0], [0], [1], [0, 0, 1, 1], [], []>} : vector<9x13xbf16>, vector<13x32xbf16>, vector<9x32xf32> -> vector<9x32xf32>
    %91 = vector.broadcast %6 : vector<9x1xf32> to vector<9x32xf32>
    %92 = arith.mulf %90, %91 : vector<9x32xf32>
    %93 = arith.truncf %92 : vector<9x32xf32> to vector<9x32xbf16>
    %cst_56 = arith.constant dense<0.000000e+00> : vector<7x32xf32>
    %94 = tpu.matmul %1, %93, %cst_56 {dimension_numbers = #tpu.dot_dimension_numbers<[1], [0], [0], [1], [0, 0, 1, 1], [], []>} : vector<7x9xbf16>, vector<9x32xbf16>, vector<7x32xf32> -> vector<7x32xf32>
    %95 = vector.broadcast %7 : vector<7x1xf32> to vector<7x32xf32>
    %96 = arith.mulf %94, %95 : vector<7x32xf32>
    %97 = arith.truncf %96 : vector<7x32xf32> to vector<7x32xbf16>
    %cst_57 = arith.constant dense<0.000000e+00> : vector<9x32xf32>
    %98 = tpu.matmul %2, %97, %cst_57 {dimension_numbers = #tpu.dot_dimension_numbers<[1], [0], [0], [1], [0, 0, 1, 1], [], []>} : vector<9x7xbf16>, vector<7x32xbf16>, vector<9x32xf32> -> vector<9x32xf32>
    %99 = arith.truncf %98 : vector<9x32xf32> to vector<9x32xbf16>
    %c0_58 = arith.constant 0 : index
    %c0_59 = arith.constant 0 : index
    %100 = vector.load %arg15[%c0_58, %c0_59] : memref<32x32xbf16, #tpu.memory_space<vmem>>, vector<32x32xbf16>
    %cst_60 = arith.constant dense<0.000000e+00> : vector<9x32xf32>
    %101 = tpu.matmul %99, %100, %cst_60 {dimension_numbers = #tpu.dot_dimension_numbers<[1], [0], [0], [1], [0, 0, 1, 1], [], []>} : vector<9x32xbf16>, vector<32x32xbf16>, vector<9x32xf32> -> vector<9x32xf32>
    %c0_61 = arith.constant 0 : index
    %c0_62 = arith.constant 0 : index
    %102 = vector.load %arg23[%c0_61, %c0_62] : memref<1x32xf32, #tpu.memory_space<vmem>>, vector<1x32xf32>
    %103 = vector.broadcast %102 : vector<1x32xf32> to vector<9x32xf32>
    %104 = arith.addf %101, %103 : vector<9x32xf32>
    %105 = vector.broadcast %9 : vector<9x1xf32> to vector<9x32xf32>
    %106 = arith.mulf %104, %105 : vector<9x32xf32>
    %107 = math.tanh %106 : vector<9x32xf32>
    %108 = arith.truncf %107 : vector<9x32xf32> to vector<9x32xbf16>
    %cst_63 = arith.constant dense<0.000000e+00> : vector<7x32xf32>
    %109 = tpu.matmul %3, %108, %cst_63 {dimension_numbers = #tpu.dot_dimension_numbers<[1], [0], [0], [1], [0, 0, 1, 1], [], []>} : vector<7x9xbf16>, vector<9x32xbf16>, vector<7x32xf32> -> vector<7x32xf32>
    %110 = vector.broadcast %7 : vector<7x1xf32> to vector<7x32xf32>
    %111 = arith.mulf %109, %110 : vector<7x32xf32>
    %112 = arith.truncf %111 : vector<7x32xf32> to vector<7x32xbf16>
    %cst_64 = arith.constant dense<0.000000e+00> : vector<9x32xf32>
    %113 = tpu.matmul %4, %112, %cst_64 {dimension_numbers = #tpu.dot_dimension_numbers<[1], [0], [0], [1], [0, 0, 1, 1], [], []>} : vector<9x7xbf16>, vector<7x32xbf16>, vector<9x32xf32> -> vector<9x32xf32>
    %114 = vector.broadcast %6 : vector<9x1xf32> to vector<9x32xf32>
    %115 = arith.mulf %113, %114 : vector<9x32xf32>
    %116 = arith.truncf %115 : vector<9x32xf32> to vector<9x32xbf16>
    %cst_65 = arith.constant dense<0.000000e+00> : vector<13x32xf32>
    %117 = tpu.matmul %5, %116, %cst_65 {dimension_numbers = #tpu.dot_dimension_numbers<[1], [0], [0], [1], [0, 0, 1, 1], [], []>} : vector<13x9xbf16>, vector<9x32xbf16>, vector<13x32xf32> -> vector<13x32xf32>
    %118 = arith.truncf %117 : vector<13x32xf32> to vector<13x32xbf16>
    %c0_66 = arith.constant 0 : index
    %c0_67 = arith.constant 0 : index
    %119 = vector.load %arg16[%c0_66, %c0_67] : memref<32x32xbf16, #tpu.memory_space<vmem>>, vector<32x32xbf16>
    %cst_68 = arith.constant dense<0.000000e+00> : vector<13x32xf32>
    %120 = tpu.matmul %118, %119, %cst_68 {dimension_numbers = #tpu.dot_dimension_numbers<[1], [0], [0], [1], [0, 0, 1, 1], [], []>} : vector<13x32xbf16>, vector<32x32xbf16>, vector<13x32xf32> -> vector<13x32xf32>
    %c0_69 = arith.constant 0 : index
    %c0_70 = arith.constant 0 : index
    %121 = vector.load %arg24[%c0_69, %c0_70] : memref<1x32xf32, #tpu.memory_space<vmem>>, vector<1x32xf32>
    %122 = vector.broadcast %121 : vector<1x32xf32> to vector<13x32xf32>
    %123 = arith.addf %120, %122 : vector<13x32xf32>
    %124 = vector.broadcast %8 : vector<13x1xf32> to vector<13x32xf32>
    %125 = arith.mulf %123, %124 : vector<13x32xf32>
    %126 = math.tanh %125 : vector<13x32xf32>
    %c0_71 = arith.constant 0 : index
    %c64 = arith.constant 64 : index
    %127 = vector.load %arg27[%c0_71, %c64] : memref<13x97xf32, #tpu.memory_space<vmem>>, vector<13x32xf32>
    tpu.vector_store %arg27[%c0_71, %c64], %126 {strides = array<i32>} : memref<13x97xf32, #tpu.memory_space<vmem>>, vector<13x32xf32>,
    %128 = arith.truncf %126 : vector<13x32xf32> to vector<13x32xbf16>
    %cst_72 = arith.constant dense<0.000000e+00> : vector<9x32xf32>
    %129 = tpu.matmul %0, %128, %cst_72 {dimension_numbers = #tpu.dot_dimension_numbers<[1], [0], [0], [1], [0, 0, 1, 1], [], []>} : vector<9x13xbf16>, vector<13x32xbf16>, vector<9x32xf32> -> vector<9x32xf32>
    %130 = vector.broadcast %6 : vector<9x1xf32> to vector<9x32xf32>
    %131 = arith.mulf %129, %130 : vector<9x32xf32>
    %132 = arith.truncf %131 : vector<9x32xf32> to vector<9x32xbf16>
    %cst_73 = arith.constant dense<0.000000e+00> : vector<7x32xf32>
    %133 = tpu.matmul %1, %132, %cst_73 {dimension_numbers = #tpu.dot_dimension_numbers<[1], [0], [0], [1], [0, 0, 1, 1], [], []>} : vector<7x9xbf16>, vector<9x32xbf16>, vector<7x32xf32> -> vector<7x32xf32>
    %134 = vector.broadcast %7 : vector<7x1xf32> to vector<7x32xf32>
    %135 = arith.mulf %133, %134 : vector<7x32xf32>
    %136 = arith.truncf %135 : vector<7x32xf32> to vector<7x32xbf16>
    %cst_74 = arith.constant dense<0.000000e+00> : vector<9x32xf32>
    %137 = tpu.matmul %2, %136, %cst_74 {dimension_numbers = #tpu.dot_dimension_numbers<[1], [0], [0], [1], [0, 0, 1, 1], [], []>} : vector<9x7xbf16>, vector<7x32xbf16>, vector<9x32xf32> -> vector<9x32xf32>
    %138 = arith.truncf %137 : vector<9x32xf32> to vector<9x32xbf16>
    %c0_75 = arith.constant 0 : index
    %c0_76 = arith.constant 0 : index
    %139 = vector.load %arg17[%c0_75, %c0_76] : memref<32x1xbf16, #tpu.memory_space<vmem>>, vector<32x1xbf16>
    %cst_77 = arith.constant dense<0.000000e+00> : vector<9x1xf32>
    %140 = tpu.matmul %138, %139, %cst_77 {dimension_numbers = #tpu.dot_dimension_numbers<[1], [0], [0], [1], [0, 0, 1, 1], [], []>} : vector<9x32xbf16>, vector<32x1xbf16>, vector<9x1xf32> -> vector<9x1xf32>
    %c0_78 = arith.constant 0 : index
    %c0_79 = arith.constant 0 : index
    %141 = vector.load %arg25[%c0_78, %c0_79] : memref<1x1xf32, #tpu.memory_space<vmem>>, vector<1x1xf32>
    %142 = vector.broadcast %141 : vector<1x1xf32> to vector<9x1xf32>
    %143 = arith.addf %140, %142 : vector<9x1xf32>
    %144 = arith.mulf %143, %9 : vector<9x1xf32>
    %145 = math.tanh %144 : vector<9x1xf32>
    %146 = arith.truncf %145 : vector<9x1xf32> to vector<9x1xbf16>
    %cst_80 = arith.constant dense<0.000000e+00> : vector<7x1xf32>
    %147 = tpu.matmul %3, %146, %cst_80 {dimension_numbers = #tpu.dot_dimension_numbers<[1], [0], [0], [1], [0, 0, 1, 1], [], []>} : vector<7x9xbf16>, vector<9x1xbf16>, vector<7x1xf32> -> vector<7x1xf32>
    %148 = arith.mulf %147, %7 : vector<7x1xf32>
    %149 = arith.truncf %148 : vector<7x1xf32> to vector<7x1xbf16>
    %cst_81 = arith.constant dense<0.000000e+00> : vector<9x1xf32>
    %150 = tpu.matmul %4, %149, %cst_81 {dimension_numbers = #tpu.dot_dimension_numbers<[1], [0], [0], [1], [0, 0, 1, 1], [], []>} : vector<9x7xbf16>, vector<7x1xbf16>, vector<9x1xf32> -> vector<9x1xf32>
    %151 = arith.mulf %150, %6 : vector<9x1xf32>
    %152 = arith.truncf %151 : vector<9x1xf32> to vector<9x1xbf16>
    %cst_82 = arith.constant dense<0.000000e+00> : vector<13x1xf32>
    %153 = tpu.matmul %5, %152, %cst_82 {dimension_numbers = #tpu.dot_dimension_numbers<[1], [0], [0], [1], [0, 0, 1, 1], [], []>} : vector<13x9xbf16>, vector<9x1xbf16>, vector<13x1xf32> -> vector<13x1xf32>
    %154 = arith.truncf %153 : vector<13x1xf32> to vector<13x1xbf16>
    %c0_83 = arith.constant 0 : index
    %c0_84 = arith.constant 0 : index
    %155 = vector.load %arg18[%c0_83, %c0_84] : memref<1x1xbf16, #tpu.memory_space<vmem>>, vector<1x1xbf16>
    %cst_85 = arith.constant dense<0.000000e+00> : vector<13x1xf32>
    %156 = tpu.matmul %154, %155, %cst_85 {dimension_numbers = #tpu.dot_dimension_numbers<[1], [0], [0], [1], [0, 0, 1, 1], [], []>} : vector<13x1xbf16>, vector<1x1xbf16>, vector<13x1xf32> -> vector<13x1xf32>
    %c0_86 = arith.constant 0 : index
    %c0_87 = arith.constant 0 : index
    %157 = vector.load %arg26[%c0_86, %c0_87] : memref<1x1xf32, #tpu.memory_space<vmem>>, vector<1x1xf32>
    %158 = vector.broadcast %157 : vector<1x1xf32> to vector<13x1xf32>
    %159 = arith.addf %156, %158 : vector<13x1xf32>
    %160 = arith.mulf %159, %8 : vector<13x1xf32>
    %161 = math.tanh %160 : vector<13x1xf32>
    %c0_88 = arith.constant 0 : index
    %c96 = arith.constant 96 : index
    %162 = vector.load %arg27[%c0_88, %c96] : memref<13x97xf32, #tpu.memory_space<vmem>>, vector<13x1xf32>
    tpu.vector_store %arg27[%c0_88, %c96], %161 {strides = array<i32>} : memref<13x97xf32, #tpu.memory_space<vmem>>, vector<13x1xf32>,
    return
  }
}

</mosaic_0001>

<llo_original>
// kernel: tpu_custom_call.1
$region0: #{tpu_custom_call.1}
  #allocation0 [shape = 'u32[]', space=smem, size = 0x4, offset = 0x4, fixed_abs, tag = 'smem constant byte address 0x4 - core index']
  #allocation1 [shape = 'u32[72,128]{1,0:T(1,128)}', space=vmem, size = 0x9000, scoped, tag = 'internal scratch']
  #allocation2 [shape = 'bf16[1,1]{1,0:T(2,128)S(1)}', space=vmem, size = 0x200, scoped, tag = 'scoped memory for tpu_custom_call.1']
  #allocation3 [shape = 'f32[1,1]{1,0:T(1,128)S(1)}', space=vmem, size = 0x200, scoped, tag = 'scoped memory for tpu_custom_call.1']
  #allocation4 [shape = 'f32[1,1]{1,0:T(1,128)S(1)}', space=vmem, size = 0x200, scoped, tag = 'scoped memory for tpu_custom_call.1']
  %s0 = inlined_call_operand.vmem [shape: f32[13,4], index: 0, kind: input, shape index: {}]
  %s1 = inlined_call_operand.vmem [shape: bf16[9,13], index: 1, kind: input, shape index: {}]
  %s2 = inlined_call_operand.vmem [shape: bf16[7,9], index: 2, kind: input, shape index: {}]
  %s3 = inlined_call_operand.vmem [shape: bf16[9,7], index: 3, kind: input, shape index: {}]
  %s4 = inlined_call_operand.vmem [shape: bf16[7,9], index: 4, kind: input, shape index: {}]
  %s5 = inlined_call_operand.vmem [shape: bf16[9,7], index: 5, kind: input, shape index: {}]
  %s6 = inlined_call_operand.vmem [shape: bf16[13,9], index: 6, kind: input, shape index: {}]
  %s7 = inlined_call_operand.vmem [shape: f32[9,1], index: 7, kind: input, shape index: {}]
  %s8 = inlined_call_operand.vmem [shape: f32[7,1], index: 8, kind: input, shape index: {}]
  %s9 = inlined_call_operand.vmem [shape: f32[13,1], index: 9, kind: input, shape index: {}]
  %s10 = inlined_call_operand.vmem [shape: f32[9,1], index: 10, kind: input, shape index: {}]
  %s11 = inlined_call_operand.vmem [shape: bf16[4,32], index: 11, kind: input, shape index: {}]
  %s12 = inlined_call_operand.vmem [shape: bf16[32,32], index: 12, kind: input, shape index: {}]
  %s13 = inlined_call_operand.vmem [shape: bf16[32,32], index: 13, kind: input, shape index: {}]
  %s14 = inlined_call_operand.vmem [shape: bf16[32,32], index: 14, kind: input, shape index: {}]
  %s15 = inlined_call_operand.vmem [shape: bf16[32,32], index: 15, kind: input, shape index: {}]
  %s16 = inlined_call_operand.vmem [shape: bf16[32,32], index: 16, kind: input, shape index: {}]
  %s17 = inlined_call_operand.vmem [shape: bf16[32,1], index: 17, kind: input, shape index: {}]
  %s18 = inlined_call_operand.<no memory space> [shape: bf16[1,1], index: 18, kind: input, shape index: {}]
  %s19 = inlined_call_operand.vmem [shape: f32[1,32], index: 19, kind: input, shape index: {}]
  %s20 = inlined_call_operand.vmem [shape: f32[1,32], index: 20, kind: input, shape index: {}]
  %s21 = inlined_call_operand.vmem [shape: f32[1,32], index: 21, kind: input, shape index: {}]
  %s22 = inlined_call_operand.vmem [shape: f32[1,32], index: 22, kind: input, shape index: {}]
  %s23 = inlined_call_operand.vmem [shape: f32[1,32], index: 23, kind: input, shape index: {}]
  %s24 = inlined_call_operand.vmem [shape: f32[1,32], index: 24, kind: input, shape index: {}]
  %s25 = inlined_call_operand.<no memory space> [shape: f32[1,1], index: 25, kind: input, shape index: {}]
  %s26 = inlined_call_operand.<no memory space> [shape: f32[1,1], index: 26, kind: input, shape index: {}]
  %s27 = inlined_call_operand.hbm [shape: f32[13,97], index: 27, kind: output, shape index: {}]
  %s28 = sld [smem:[#allocation0]]
  $region118: #{tpu_custom_call.1} parent=0
    _
  %s30 = ssub.s32 1, %s28
  %s31 = scalar_select 0, %s30, %s28
  %v32 = vstv %s18
  %33 = vst [vmem:[#allocation2] sm:$0x1] %v32
  %v34 = vstv %s25
  %35 = vst [vmem:[#allocation3] sm:$0x1] %v34
  %v36 = vstv %s26
  %37 = vst [vmem:[#allocation4] sm:$0x1] %v36
  $region1: #{tpu_custom_call.1} parent=0
    #allocation5 [shape = 'u8[8192]{0}', space=vmem, size = 0x2000, scoped, tag = 'output window, operand 0, single buffered']
    #allocation6 [shape = 's32[1]{0}', space=sflag, size = 0x4, scoped, tag = 'scoped memory for tpu_custom_call.1']
    %38 = vsyncpa [#allocation6], 0
    // Predicated region
    $region2: #{tpu_custom_call.1} parent=1 // pred_check
      _
    $region3: #{tpu_custom_call.1} parent=1 // pred_check_branch
      %40 = sbr.rel (0) target = $region5
    $region4: #{tpu_custom_call.1} parent=1 // pred_region
      _
    $region5: #{tpu_custom_call.1} parent=1 // pred_fallthru
      _
    // Predicated region
    $region6: #{tpu_custom_call.1} parent=1 // pred_check
      _
    $region7: #{tpu_custom_call.1} parent=1 // pred_check_branch
      %42 = sbr.rel (0) target = $region9
    $region8: #{tpu_custom_call.1} parent=1 // pred_region
      _
    $region9: #{tpu_custom_call.1} parent=1 // pred_fallthru
      _
    // Predicated region
    $region10: #{tpu_custom_call.1} parent=1 // pred_check
      _
    $region11: #{tpu_custom_call.1} parent=1 // pred_check_branch
      %44 = sbr.rel (0) target = $region13
    $region12: #{tpu_custom_call.1} parent=1 // pred_region
      _
    $region13: #{tpu_custom_call.1} parent=1 // pred_fallthru
      _
    // Predicated region
    $region14: #{tpu_custom_call.1} parent=1 // pred_check
      _
    $region15: #{tpu_custom_call.1} parent=1 // pred_check_branch
      %46 = sbr.rel (0) target = $region17
    $region16: #{tpu_custom_call.1} parent=1 // pred_region
      _
    $region17: #{tpu_custom_call.1} parent=1 // pred_fallthru
      _
    // Predicated region
    $region18: #{tpu_custom_call.1} parent=1 // pred_check
      _
    $region19: #{tpu_custom_call.1} parent=1 // pred_check_branch
      %48 = sbr.rel (0) target = $region21
    $region20: #{tpu_custom_call.1} parent=1 // pred_region
      _
    $region21: #{tpu_custom_call.1} parent=1 // pred_fallthru
      _
    // Predicated region
    $region22: #{tpu_custom_call.1} parent=1 // pred_check
      _
    $region23: #{tpu_custom_call.1} parent=1 // pred_check_branch
      %50 = sbr.rel (0) target = $region25
    $region24: #{tpu_custom_call.1} parent=1 // pred_region
      _
    $region25: #{tpu_custom_call.1} parent=1 // pred_fallthru
      _
    // Predicated region
    $region26: #{tpu_custom_call.1} parent=1 // pred_check
      _
    $region27: #{tpu_custom_call.1} parent=1 // pred_check_branch
      %52 = sbr.rel (0) target = $region29
    $region28: #{tpu_custom_call.1} parent=1 // pred_region
      _
    $region29: #{tpu_custom_call.1} parent=1 // pred_fallthru
      _
    // Predicated region
    $region30: #{tpu_custom_call.1} parent=1 // pred_check
      _
    $region31: #{tpu_custom_call.1} parent=1 // pred_check_branch
      %54 = sbr.rel (0) target = $region33
    $region32: #{tpu_custom_call.1} parent=1 // pred_region
      _
    $region33: #{tpu_custom_call.1} parent=1 // pred_fallthru
      _
    // Predicated region
    $region34: #{tpu_custom_call.1} parent=1 // pred_check
      _
    $region35: #{tpu_custom_call.1} parent=1 // pred_check_branch
      %56 = sbr.rel (0) target = $region37
    $region36: #{tpu_custom_call.1} parent=1 // pred_region
      _
    $region37: #{tpu_custom_call.1} parent=1 // pred_fallthru
      _
    // Predicated region
    $region38: #{tpu_custom_call.1} parent=1 // pred_check
      _
    $region39: #{tpu_custom_call.1} parent=1 // pred_check_branch
      %58 = sbr.rel (0) target = $region41
    $region40: #{tpu_custom_call.1} parent=1 // pred_region
      _
    $region41: #{tpu_custom_call.1} parent=1 // pred_fallthru
      _
    // Predicated region
    $region42: #{tpu_custom_call.1} parent=1 // pred_check
      _
    $region43: #{tpu_custom_call.1} parent=1 // pred_check_branch
      %60 = sbr.rel (0) target = $region45
    $region44: #{tpu_custom_call.1} parent=1 // pred_region
      _
    $region45: #{tpu_custom_call.1} parent=1 // pred_fallthru
      _
    // Predicated region
    $region46: #{tpu_custom_call.1} parent=1 // pred_check
      _
    $region47: #{tpu_custom_call.1} parent=1 // pred_check_branch
      %62 = sbr.rel (0) target = $region49
    $region48: #{tpu_custom_call.1} parent=1 // pred_region
      _
    $region49: #{tpu_custom_call.1} parent=1 // pred_fallthru
      _
    // Predicated region
    $region50: #{tpu_custom_call.1} parent=1 // pred_check
      _
    $region51: #{tpu_custom_call.1} parent=1 // pred_check_branch
      %64 = sbr.rel (0) target = $region53
    $region52: #{tpu_custom_call.1} parent=1 // pred_region
      _
    $region53: #{tpu_custom_call.1} parent=1 // pred_fallthru
      _
    // Predicated region
    $region54: #{tpu_custom_call.1} parent=1 // pred_check
      _
    $region55: #{tpu_custom_call.1} parent=1 // pred_check_branch
      %66 = sbr.rel (0) target = $region57
    $region56: #{tpu_custom_call.1} parent=1 // pred_region
      _
    $region57: #{tpu_custom_call.1} parent=1 // pred_fallthru
      _
    // Predicated region
    $region58: #{tpu_custom_call.1} parent=1 // pred_check
      _
    $region59: #{tpu_custom_call.1} parent=1 // pred_check_branch
      %68 = sbr.rel (0) target = $region61
    $region60: #{tpu_custom_call.1} parent=1 // pred_region
      _
    $region61: #{tpu_custom_call.1} parent=1 // pred_fallthru
      _
    // Predicated region
    $region62: #{tpu_custom_call.1} parent=1 // pred_check
      _
    $region63: #{tpu_custom_call.1} parent=1 // pred_check_branch
      %70 = sbr.rel (0) target = $region65
    $region64: #{tpu_custom_call.1} parent=1 // pred_region
      _
    $region65: #{tpu_custom_call.1} parent=1 // pred_fallthru
      _
    // Predicated region
    $region66: #{tpu_custom_call.1} parent=1 // pred_check
      _
    $region67: #{tpu_custom_call.1} parent=1 // pred_check_branch
      %72 = sbr.rel (0) target = $region69
    $region68: #{tpu_custom_call.1} parent=1 // pred_region
      _
    $region69: #{tpu_custom_call.1} parent=1 // pred_fallthru
      _
    // Predicated region
    $region70: #{tpu_custom_call.1} parent=1 // pred_check
      _
    $region71: #{tpu_custom_call.1} parent=1 // pred_check_branch
      %74 = sbr.rel (0) target = $region73
    $region72: #{tpu_custom_call.1} parent=1 // pred_region
      _
    $region73: #{tpu_custom_call.1} parent=1 // pred_fallthru
      _
    // Predicated region
    $region74: #{tpu_custom_call.1} parent=1 // pred_check
      _
    $region75: #{tpu_custom_call.1} parent=1 // pred_check_branch
      %76 = sbr.rel (0) target = $region77
    $region76: #{tpu_custom_call.1} parent=1 // pred_region
      _
    $region77: #{tpu_custom_call.1} parent=1 // pred_fallthru
      _
    // Predicated region
    $region78: #{tpu_custom_call.1} parent=1 // pred_check
      _
    $region79: #{tpu_custom_call.1} parent=1 // pred_check_branch
      %78 = sbr.rel (0) target = $region81
    $region80: #{tpu_custom_call.1} parent=1 // pred_region
      _
    $region81: #{tpu_custom_call.1} parent=1 // pred_fallthru
      _
    // Predicated region
    $region82: #{tpu_custom_call.1} parent=1 // pred_check
      _
    $region83: #{tpu_custom_call.1} parent=1 // pred_check_branch
      %80 = sbr.rel (0) target = $region85
    $region84: #{tpu_custom_call.1} parent=1 // pred_region
      _
    $region85: #{tpu_custom_call.1} parent=1 // pred_fallthru
      _
    // Predicated region
    $region86: #{tpu_custom_call.1} parent=1 // pred_check
      _
    $region87: #{tpu_custom_call.1} parent=1 // pred_check_branch
      %82 = sbr.rel (0) target = $region89
    $region88: #{tpu_custom_call.1} parent=1 // pred_region
      _
    $region89: #{tpu_custom_call.1} parent=1 // pred_fallthru
      _
    // Predicated region
    $region90: #{tpu_custom_call.1} parent=1 // pred_check
      _
    $region91: #{tpu_custom_call.1} parent=1 // pred_check_branch
      %84 = sbr.rel (0) target = $region93
    $region92: #{tpu_custom_call.1} parent=1 // pred_region
      _
    $region93: #{tpu_custom_call.1} parent=1 // pred_fallthru
      _
    // Predicated region
    $region94: #{tpu_custom_call.1} parent=1 // pred_check
      _
    $region95: #{tpu_custom_call.1} parent=1 // pred_check_branch
      %86 = sbr.rel (0) target = $region97
    $region96: #{tpu_custom_call.1} parent=1 // pred_region
      _
    $region97: #{tpu_custom_call.1} parent=1 // pred_fallthru
      _
    // Predicated region
    $region98: #{tpu_custom_call.1} parent=1 // pred_check
      _
    $region99: #{tpu_custom_call.1} parent=1 // pred_check_branch
      %88 = sbr.rel (0) target = $region101
    $region100: #{tpu_custom_call.1} parent=1 // pred_region
      _
    $region101: #{tpu_custom_call.1} parent=1 // pred_fallthru
      _
    // Predicated region
    $region102: #{tpu_custom_call.1} parent=1 // pred_check
      _
    $region103: #{tpu_custom_call.1} parent=1 // pred_check_branch
      %90 = sbr.rel (0) target = $region105
    $region104: #{tpu_custom_call.1} parent=1 // pred_region
      _
    $region105: #{tpu_custom_call.1} parent=1 // pred_fallthru
      _
    // Predicated region
    $region106: #{tpu_custom_call.1} parent=1 // pred_check
      _
    $region107: #{tpu_custom_call.1} parent=1 // pred_check_branch
      %92 = sbr.rel (0) target = $region109
    $region108: #{tpu_custom_call.1} parent=1 // pred_region
      _
    $region109: #{tpu_custom_call.1} parent=1 // pred_fallthru
      _
    %v94 = vld [vmem:[%s1] sm:$0xf]
    %v95 = vld [vmem:[%s1 + $0x4] sm:$0x1]
    %v96 = vld [vmem:[%s2] sm:$0xf]
    %v97 = vld [vmem:[%s3] sm:$0xf]
    %v98 = vld [vmem:[%s3 + $0x4] sm:$0x1]
    %v99 = vld [vmem:[%s4] sm:$0xf]
    %v100 = vld [vmem:[%s5] sm:$0xf]
    %v101 = vld [vmem:[%s5 + $0x4] sm:$0x1]
    %v102 = vld [vmem:[%s6] sm:$0xf]
    %v103 = vld [vmem:[%s6 + $0x4] sm:$0x7]
    %v104 = vld [vmem:[%s7] sm:$0xff]
    %v105 = vld [vmem:[%s7 + $0x8] sm:$0x1]
    %v106 = vld [vmem:[%s8] sm:$0x7f]
    %v107 = vld [vmem:[%s9] sm:$0xff]
    %v108 = vld [vmem:[%s9 + $0x8] sm:$0x1f]
    %v109 = vld [vmem:[%s10] sm:$0xff]
    %v110 = vld [vmem:[%s10 + $0x8] sm:$0x1]
    %v111 = vld [vmem:[%s0] sm:$0xff]
    %v112 = vld [vmem:[%s0 + $0x8] sm:$0x1f]
    %v113 = vpack.c.bf16 %v112, %v111
    %v116 = vunpack.c.l.b16 %v94
    %v117 = vunpack.c.l.b16 %v95
    %v118 = vpack.c.b16 %v117, %v116
    %vm119 = vcmask 105472
    %v121 = vsel %vm119, %v118, 0
    %vm123 = vcmask 1045504
    %vm124 = vcmask 1046528
    %v125 = vsel %vm123, 4294967295, 65535
    %v126 = vsel %vm124, %v125, 0
    %v128 = vand.u32 %v113, %v126
    %130 = vmatpush.bf16.msra.mxu0 0
    %131 = vmatpush.bf16.msra.mxu0 0
    %132 = vmatpush.bf16.msra.mxu0 0
    %133 = vmatpush.bf16.msra.mxu0 0
    %134 = vmatpush.bf16.msra.mxu0 0
    %135 = vmatpush.bf16.msra.mxu0 0
    %136 = vmatpush.bf16.msra.mxu0 0
    %137 = vmatpush.bf16.msra.mxu0 %v128
    %138 = vmatmul.bf16.gmra.mxu0 %v121
    %v139 = vpop.f32.mrf.mxu0
    %v140 = vadd.f32 0.0, %v139
    %v141 = vpop.f32.mrf.mxu0
    %v142 = vadd.f32 0.0, %v141
    %143 = vdwg.mxu0
    %145 = vset.pattern.permute.xlu0 0
    %146 = vperm.xlu0 %145, %v104
    %v147 = vpop.permute.xlu0 %146
    %150 = vset.pattern.permute.xlu0 0
    %151 = vperm.xlu0 %150, %v105
    %v152 = vpop.permute.xlu0 %151
    %v154 = vmul.f32 %v140, %v147
    %v155 = vmul.f32 %v142, %v152
    %v156 = vpack.c.bf16 %v155, %v154
    %vm157 = vcmask 72704
    %v159 = vsel %vm157, %v96, 0
    %vm161 = vcmask 1043456
    %vm162 = vcmask 1044480
    %v163 = vsel %vm161, 4294967295, 65535
    %v164 = vsel %vm162, %v163, 0
    %v166 = vand.u32 %v156, %v164
    %168 = vmatpush.bf16.msra.mxu0 0
    %169 = vmatpush.bf16.msra.mxu0 0
    %170 = vmatpush.bf16.msra.mxu0 0
    %171 = vmatpush.bf16.msra.mxu0 0
    %172 = vmatpush.bf16.msra.mxu0 0
    %173 = vmatpush.bf16.msra.mxu0 0
    %174 = vmatpush.bf16.msra.mxu0 0
    %175 = vmatpush.bf16.msra.mxu0 %v166
    %176 = vmatmul.bf16.gmra.mxu0 %v159
    %v177 = vpop.f32.mrf.mxu0
    %v178 = vadd.f32 0.0, %v177
    %v179 = vpop.f32.mrf.mxu0
    %180 = vdwg.mxu0
    %182 = vset.pattern.permute.xlu0 0
    %183 = vperm.xlu0 %182, %v106
    %v184 = vpop.permute.xlu0 %183
    %v186 = vmul.f32 %v178, %v184
    %v187 = vpack.c.bf16 %v186, %v186
    %v190 = vunpack.c.l.b16 %v97
    %v191 = vunpack.c.l.b16 %v98
    %v192 = vpack.c.b16 %v191, %v190
    %vm193 = vcmask 56320
    %v195 = vsel %vm193, %v192, 0
    %vm197 = vcmask 1042432
    %v198 = vsel %vm197, 4294967295, 65535
    %v199 = vsel %vm161, %v198, 0
    %v201 = vand.u32 %v187, %v199
    %203 = vmatpush.bf16.msra.mxu0 0
    %204 = vmatpush.bf16.msra.mxu0 0
    %205 = vmatpush.bf16.msra.mxu0 0
    %206 = vmatpush.bf16.msra.mxu0 0
    %207 = vmatpush.bf16.msra.mxu0 0
    %208 = vmatpush.bf16.msra.mxu0 0
    %209 = vmatpush.bf16.msra.mxu0 0
    %210 = vmatpush.bf16.msra.mxu0 %v201
    %211 = vmatmul.bf16.gmra.mxu0 %v195
    %v212 = vpop.f32.mrf.mxu0
    %v213 = vadd.f32 0.0, %v212
    %v214 = vpop.f32.mrf.mxu0
    %v215 = vadd.f32 0.0, %v214
    %216 = vdwg.mxu0
    %v217 = vpack.c.bf16 %v215, %v213
    %v218 = vld [vmem:[%s11] sm:$0x3]
    %v219 = vld [vmem:[%s19] sm:$0x1]
    %v221 = vperm.slane %v219, 0
    %vm223 = vcmask 31744
    %v225 = vsel %vm223, %v217, 0
    %vm227 = vcmask 1041408
    %v229 = vsel %vm227, %v218, 0
    %231 = vmatpush.bf16.msra.mxu0 0
    %232 = vmatpush.bf16.msra.mxu0 0
    %233 = vmatpush.bf16.msra.mxu0 0
    %234 = vmatpush.bf16.msra.mxu0 0
    %235 = vmatpush.bf16.msra.mxu0 0
    %236 = vmatpush.bf16.msra.mxu0 0
    %237 = vmatpush.bf16.msra.mxu0 0
    %238 = vmatpush.bf16.msra.mxu0 %v229
    %239 = vmatmul.bf16.gmra.mxu0 %v225
    %v240 = vpop.f32.mrf.mxu0
    %v241 = vadd.f32 %v221, %v240
    %v242 = vpop.f32.mrf.mxu0
    %v243 = vadd.f32 %v221, %v242
    %244 = vdwg.mxu0
    %246 = vset.pattern.permute.xlu0 0
    %247 = vperm.xlu0 %246, %v109
    %v248 = vpop.permute.xlu0 %247
    %251 = vset.pattern.permute.xlu0 0
    %252 = vperm.xlu0 %251, %v110
    %v253 = vpop.permute.xlu0 %252
    %v255 = vmul.f32 %v241, %v248
    %v256 = vmul.f32 %v243, %v253
    %v257 = vtanh.pop %v255
    %v258 = vtanh.pop %v256
    %v259 = vpack.c.bf16 %v258, %v257
    %v261 = vsel %vm157, %v99, 0
    %v264 = vand.u32 %v259, %v164
    %266 = vmatpush.bf16.msra.mxu0 0
    %267 = vmatpush.bf16.msra.mxu0 0
    %268 = vmatpush.bf16.msra.mxu0 0
    %269 = vmatpush.bf16.msra.mxu0 0
    %270 = vmatpush.bf16.msra.mxu0 0
    %271 = vmatpush.bf16.msra.mxu0 0
    %272 = vmatpush.bf16.msra.mxu0 0
    %273 = vmatpush.bf16.msra.mxu0 %v264
    %274 = vmatmul.bf16.gmra.mxu0 %v261
    %v275 = vpop.f32.mrf.mxu0
    %v276 = vadd.f32 0.0, %v275
    %v277 = vpop.f32.mrf.mxu0
    %278 = vdwg.mxu0
    %v279 = vmul.f32 %v276, %v184
    %v280 = vpack.c.bf16 %v279, %v279
    %v283 = vunpack.c.l.b16 %v100
    %v284 = vunpack.c.l.b16 %v101
    %v285 = vpack.c.b16 %v284, %v283
    %v287 = vsel %vm193, %v285, 0
    %v290 = vand.u32 %v280, %v199
    %292 = vmatpush.bf16.msra.mxu0 0
    %293 = vmatpush.bf16.msra.mxu0 0
    %294 = vmatpush.bf16.msra.mxu0 0
    %295 = vmatpush.bf16.msra.mxu0 0
    %296 = vmatpush.bf16.msra.mxu0 0
    %297 = vmatpush.bf16.msra.mxu0 0
    %298 = vmatpush.bf16.msra.mxu0 0
    %299 = vmatpush.bf16.msra.mxu0 %v290
    %300 = vmatmul.bf16.gmra.mxu0 %v287
    %v301 = vpop.f32.mrf.mxu0
    %v302 = vadd.f32 0.0, %v301
    %v303 = vpop.f32.mrf.mxu0
    %v304 = vadd.f32 0.0, %v303
    %305 = vdwg.mxu0
    %v306 = vmul.f32 %v302, %v147
    %v307 = vmul.f32 %v304, %v152
    %v308 = vpack.c.bf16 %v307, %v306
    %v311 = vunpack.c.l.b16 %v102
    %v312 = vunpack.c.l.b16 %v103
    %v313 = vpack.c.b16 %v312, %v311
    %v315 = vsel %vm157, %v313, 0
    %v318 = vand.u32 %v308, %v164
    %320 = vmatpush.bf16.msra.mxu0 0
    %321 = vmatpush.bf16.msra.mxu0 0
    %322 = vmatpush.bf16.msra.mxu0 0
    %323 = vmatpush.bf16.msra.mxu0 0
    %324 = vmatpush.bf16.msra.mxu0 0
    %325 = vmatpush.bf16.msra.mxu0 0
    %326 = vmatpush.bf16.msra.mxu0 0
    %327 = vmatpush.bf16.msra.mxu0 %v318
    %328 = vmatmul.bf16.gmra.mxu0 %v315
    %v329 = vpop.f32.mrf.mxu0
    %v330 = vadd.f32 0.0, %v329
    %v331 = vpop.f32.mrf.mxu0
    %v332 = vadd.f32 0.0, %v331
    %333 = vdwg.mxu0
    %v334 = vpack.c.bf16 %v332, %v330
    %v335 = vld [vmem:[%s12] sm:$0xf]
    %v336 = vld [vmem:[%s12 + $0x4] sm:$0xf]
    %v337 = vld [vmem:[%s12 + $0x8] sm:$0xf]
    %v338 = vld [vmem:[%s12 + $0xc] sm:$0xf]
    %v339 = vld [vmem:[%s20] sm:$0x1]
    %v341 = vperm.slane %v339, 0
    %v347 = vunpack.c.l.b16 %v335
    %v348 = vunpack.c.l.b16 %v336
    %v349 = vunpack.c.l.b16 %v337
    %v350 = vunpack.c.l.b16 %v338
    %v351 = vpack.c.b16 %v348, %v347
    %v352 = vpack.c.b16 %v350, %v349
    %vm355 = vcmask 261120
    %v357 = vsel %vm355, %v334, 0
    %359 = vmatpush.bf16.msra.mxu0 0
    %360 = vmatpush.bf16.msra.mxu0 0
    %361 = vmatpush.bf16.msra.mxu0 0
    %362 = vmatpush.bf16.msra.mxu0 0
    %363 = vmatpush.bf16.msra.mxu0 0
    %364 = vmatpush.bf16.msra.mxu0 0
    %365 = vmatpush.bf16.msra.mxu0 %v352
    %366 = vmatpush.bf16.msra.mxu0 %v351
    %367 = vmatmul.bf16.gmra.mxu0 %v357
    %v368 = vpop.f32.mrf.mxu0
    %v369 = vadd.f32 %v341, %v368
    %v370 = vpop.f32.mrf.mxu0
    %v371 = vadd.f32 %v341, %v370
    %372 = vdwg.mxu0
    %374 = vset.pattern.permute.xlu0 0
    %375 = vperm.xlu0 %374, %v107
    %v376 = vpop.permute.xlu0 %375
    %379 = vset.pattern.permute.xlu0 0
    %380 = vperm.xlu0 %379, %v108
    %v381 = vpop.permute.xlu0 %380
    %v383 = vmul.f32 %v369, %v376
    %v384 = vmul.f32 %v371, %v381
    %v385 = vtanh.pop %v383
    %v386 = vtanh.pop %v384
    %387 = vst.msk [vmem:[#allocation5] sm:$0xff] %vm355, %v385
    %vm388 = vcmask 258048
    %389 = vst.msk [vmem:[#allocation5 + $0x8] sm:$0x1f] %vm388, %v386
    %v390 = vpack.c.bf16 %v386, %v385
    %v392 = vand.u32 %v390, %v126
    %394 = vmatpush.bf16.msra.mxu0 0
    %395 = vmatpush.bf16.msra.mxu0 0
    %396 = vmatpush.bf16.msra.mxu0 0
    %397 = vmatpush.bf16.msra.mxu0 0
    %398 = vmatpush.bf16.msra.mxu0 0
    %399 = vmatpush.bf16.msra.mxu0 0
    %400 = vmatpush.bf16.msra.mxu0 0
    %401 = vmatpush.bf16.msra.mxu0 %v392
    %402 = vmatmul.bf16.gmra.mxu0 %v121
    %v403 = vpop.f32.mrf.mxu0
    %v404 = vadd.f32 0.0, %v403
    %v405 = vpop.f32.mrf.mxu0
    %v406 = vadd.f32 0.0, %v405
    %407 = vdwg.mxu0
    %v408 = vmul.f32 %v404, %v147
    %v409 = vmul.f32 %v406, %v152
    %v410 = vpack.c.bf16 %v409, %v408
    %v412 = vand.u32 %v410, %v164
    %414 = vmatpush.bf16.msra.mxu0 0
    %415 = vmatpush.bf16.msra.mxu0 0
    %416 = vmatpush.bf16.msra.mxu0 0
    %417 = vmatpush.bf16.msra.mxu0 0
    %418 = vmatpush.bf16.msra.mxu0 0
    %419 = vmatpush.bf16.msra.mxu0 0
    %420 = vmatpush.bf16.msra.mxu0 0
    %421 = vmatpush.bf16.msra.mxu0 %v412
    %422 = vmatmul.bf16.gmra.mxu0 %v159
    %v423 = vpop.f32.mrf.mxu0
    %v424 = vadd.f32 0.0, %v423
    %v425 = vpop.f32.mrf.mxu0
    %426 = vdwg.mxu0
    %v427 = vmul.f32 %v424, %v184
    %v428 = vpack.c.bf16 %v427, %v427
    %v430 = vand.u32 %v428, %v199
    %432 = vmatpush.bf16.msra.mxu0 0
    %433 = vmatpush.bf16.msra.mxu0 0
    %434 = vmatpush.bf16.msra.mxu0 0
    %435 = vmatpush.bf16.msra.mxu0 0
    %436 = vmatpush.bf16.msra.mxu0 0
    %437 = vmatpush.bf16.msra.mxu0 0
    %438 = vmatpush.bf16.msra.mxu0 0
    %439 = vmatpush.bf16.msra.mxu0 %v430
    %440 = vmatmul.bf16.gmra.mxu0 %v195
    %v441 = vpop.f32.mrf.mxu0
    %v442 = vadd.f32 0.0, %v441
    %v443 = vpop.f32.mrf.mxu0
    %v444 = vadd.f32 0.0, %v443
    %445 = vdwg.mxu0
    %v446 = vpack.c.bf16 %v444, %v442
    %v447 = vld [vmem:[%s13] sm:$0xf]
    %v448 = vld [vmem:[%s13 + $0x4] sm:$0xf]
    %v449 = vld [vmem:[%s13 + $0x8] sm:$0xf]
    %v450 = vld [vmem:[%s13 + $0xc] sm:$0xf]
    %v451 = vld [vmem:[%s21] sm:$0x1]
    %v453 = vperm.slane %v451, 0
    %v459 = vunpack.c.l.b16 %v447
    %v460 = vunpack.c.l.b16 %v448
    %v461 = vunpack.c.l.b16 %v449
    %v462 = vunpack.c.l.b16 %v450
    %v463 = vpack.c.b16 %v460, %v459
    %v464 = vpack.c.b16 %v462, %v461
    %v468 = vsel %vm355, %v446, 0
    %470 = vmatpush.bf16.msra.mxu0 0
    %471 = vmatpush.bf16.msra.mxu0 0
    %472 = vmatpush.bf16.msra.mxu0 0
    %473 = vmatpush.bf16.msra.mxu0 0
    %474 = vmatpush.bf16.msra.mxu0 0
    %475 = vmatpush.bf16.msra.mxu0 0
    %476 = vmatpush.bf16.msra.mxu0 %v464
    %477 = vmatpush.bf16.msra.mxu0 %v463
    %478 = vmatmul.bf16.gmra.mxu0 %v468
    %v479 = vpop.f32.mrf.mxu0
    %v480 = vadd.f32 %v453, %v479
    %v481 = vpop.f32.mrf.mxu0
    %v482 = vadd.f32 %v453, %v481
    %483 = vdwg.mxu0
    %v484 = vmul.f32 %v480, %v248
    %v485 = vmul.f32 %v482, %v253
    %v486 = vtanh.pop %v484
    %v487 = vtanh.pop %v485
    %v488 = vpack.c.bf16 %v487, %v486
    %v490 = vand.u32 %v488, %v164
    %492 = vmatpush.bf16.msra.mxu0 0
    %493 = vmatpush.bf16.msra.mxu0 0
    %494 = vmatpush.bf16.msra.mxu0 0
    %495 = vmatpush.bf16.msra.mxu0 0
    %496 = vmatpush.bf16.msra.mxu0 0
    %497 = vmatpush.bf16.msra.mxu0 0
    %498 = vmatpush.bf16.msra.mxu0 0
    %499 = vmatpush.bf16.msra.mxu0 %v490
    %500 = vmatmul.bf16.gmra.mxu0 %v261
    %v501 = vpop.f32.mrf.mxu0
    %v502 = vadd.f32 0.0, %v501
    %v503 = vpop.f32.mrf.mxu0
    %504 = vdwg.mxu0
    %v505 = vmul.f32 %v502, %v184
    %v506 = vpack.c.bf16 %v505, %v505
    %v508 = vand.u32 %v506, %v199
    %510 = vmatpush.bf16.msra.mxu0 0
    %511 = vmatpush.bf16.msra.mxu0 0
    %512 = vmatpush.bf16.msra.mxu0 0
    %513 = vmatpush.bf16.msra.mxu0 0
    %514 = vmatpush.bf16.msra.mxu0 0
    %515 = vmatpush.bf16.msra.mxu0 0
    %516 = vmatpush.bf16.msra.mxu0 0
    %517 = vmatpush.bf16.msra.mxu0 %v508
    %518 = vmatmul.bf16.gmra.mxu0 %v287
    %v519 = vpop.f32.mrf.mxu0
    %v520 = vadd.f32 0.0, %v519
    %v521 = vpop.f32.mrf.mxu0
    %v522 = vadd.f32 0.0, %v521
    %523 = vdwg.mxu0
    %v524 = vmul.f32 %v520, %v147
    %v525 = vmul.f32 %v522, %v152
    %v526 = vpack.c.bf16 %v525, %v524
    %v528 = vand.u32 %v526, %v164
    %530 = vmatpush.bf16.msra.mxu0 0
    %531 = vmatpush.bf16.msra.mxu0 0
    %532 = vmatpush.bf16.msra.mxu0 0
    %533 = vmatpush.bf16.msra.mxu0 0
    %534 = vmatpush.bf16.msra.mxu0 0
    %535 = vmatpush.bf16.msra.mxu0 0
    %536 = vmatpush.bf16.msra.mxu0 0
    %537 = vmatpush.bf16.msra.mxu0 %v528
    %538 = vmatmul.bf16.gmra.mxu0 %v315
    %v539 = vpop.f32.mrf.mxu0
    %v540 = vadd.f32 0.0, %v539
    %v541 = vpop.f32.mrf.mxu0
    %v542 = vadd.f32 0.0, %v541
    %543 = vdwg.mxu0
    %v544 = vpack.c.bf16 %v542, %v540
    %v545 = vld [vmem:[%s14] sm:$0xf]
    %v546 = vld [vmem:[%s14 + $0x4] sm:$0xf]
    %v547 = vld [vmem:[%s14 + $0x8] sm:$0xf]
    %v548 = vld [vmem:[%s14 + $0xc] sm:$0xf]
    %v549 = vld [vmem:[%s22] sm:$0x1]
    %v551 = vperm.slane %v549, 0
    %v557 = vunpack.c.l.b16 %v545
    %v558 = vunpack.c.l.b16 %v546
    %v559 = vunpack.c.l.b16 %v547
    %v560 = vunpack.c.l.b16 %v548
    %v561 = vpack.c.b16 %v558, %v557
    %v562 = vpack.c.b16 %v560, %v559
    %v566 = vsel %vm355, %v544, 0
    %568 = vmatpush.bf16.msra.mxu0 0
    %569 = vmatpush.bf16.msra.mxu0 0
    %570 = vmatpush.bf16.msra.mxu0 0
    %571 = vmatpush.bf16.msra.mxu0 0
    %572 = vmatpush.bf16.msra.mxu0 0
    %573 = vmatpush.bf16.msra.mxu0 0
    %574 = vmatpush.bf16.msra.mxu0 %v562
    %575 = vmatpush.bf16.msra.mxu0 %v561
    %576 = vmatmul.bf16.gmra.mxu0 %v566
    %v577 = vpop.f32.mrf.mxu0
    %v578 = vadd.f32 %v551, %v577
    %v579 = vpop.f32.mrf.mxu0
    %v580 = vadd.f32 %v551, %v579
    %581 = vdwg.mxu0
    %v582 = vmul.f32 %v578, %v376
    %v583 = vmul.f32 %v580, %v381
    %v584 = vtanh.pop %v582
    %v585 = vtanh.pop %v583
    %588 = vrot.lane.b32.xlu0 %v584, 32
    %v589 = vpop.permute.xlu0 %588
    %590 = vrot.lane.b32.xlu0 %v585, 32
    %v591 = vpop.permute.xlu0 %590
    %vm594 = vcmask 523520
    %595 = vst.msk [vmem:[#allocation5] sm:$0xff] %vm594, %v589
    %vm596 = vcmask 520448
    %597 = vst.msk [vmem:[#allocation5 + $0x8] sm:$0x1f] %vm596, %v591
    %v598 = vpack.c.bf16 %v585, %v584
    %v600 = vand.u32 %v598, %v126
    %602 = vmatpush.bf16.msra.mxu0 0
    %603 = vmatpush.bf16.msra.mxu0 0
    %604 = vmatpush.bf16.msra.mxu0 0
    %605 = vmatpush.bf16.msra.mxu0 0
    %606 = vmatpush.bf16.msra.mxu0 0
    %607 = vmatpush.bf16.msra.mxu0 0
    %608 = vmatpush.bf16.msra.mxu0 0
    %609 = vmatpush.bf16.msra.mxu0 %v600
    %610 = vmatmul.bf16.gmra.mxu0 %v121
    %v611 = vpop.f32.mrf.mxu0
    %v612 = vadd.f32 0.0, %v611
    %v613 = vpop.f32.mrf.mxu0
    %v614 = vadd.f32 0.0, %v613
    %615 = vdwg.mxu0
    %v616 = vmul.f32 %v612, %v147
    %v617 = vmul.f32 %v614, %v152
    %v618 = vpack.c.bf16 %v617, %v616
    %v620 = vand.u32 %v618, %v164
    %622 = vmatpush.bf16.msra.mxu0 0
    %623 = vmatpush.bf16.msra.mxu0 0
    %624 = vmatpush.bf16.msra.mxu0 0
    %625 = vmatpush.bf16.msra.mxu0 0
    %626 = vmatpush.bf16.msra.mxu0 0
    %627 = vmatpush.bf16.msra.mxu0 0
    %628 = vmatpush.bf16.msra.mxu0 0
    %629 = vmatpush.bf16.msra.mxu0 %v620
    %630 = vmatmul.bf16.gmra.mxu0 %v159
    %v631 = vpop.f32.mrf.mxu0
    %v632 = vadd.f32 0.0, %v631
    %v633 = vpop.f32.mrf.mxu0
    %634 = vdwg.mxu0
    %v635 = vmul.f32 %v632, %v184
    %v636 = vpack.c.bf16 %v635, %v635
    %v638 = vand.u32 %v636, %v199
    %640 = vmatpush.bf16.msra.mxu0 0
    %641 = vmatpush.bf16.msra.mxu0 0
    %642 = vmatpush.bf16.msra.mxu0 0
    %643 = vmatpush.bf16.msra.mxu0 0
    %644 = vmatpush.bf16.msra.mxu0 0
    %645 = vmatpush.bf16.msra.mxu0 0
    %646 = vmatpush.bf16.msra.mxu0 0
    %647 = vmatpush.bf16.msra.mxu0 %v638
    %648 = vmatmul.bf16.gmra.mxu0 %v195
    %v649 = vpop.f32.mrf.mxu0
    %v650 = vadd.f32 0.0, %v649
    %v651 = vpop.f32.mrf.mxu0
    %v652 = vadd.f32 0.0, %v651
    %653 = vdwg.mxu0
    %v654 = vpack.c.bf16 %v652, %v650
    %v655 = vld [vmem:[%s15] sm:$0xf]
    %v656 = vld [vmem:[%s15 + $0x4] sm:$0xf]
    %v657 = vld [vmem:[%s15 + $0x8] sm:$0xf]
    %v658 = vld [vmem:[%s15 + $0xc] sm:$0xf]
    %v659 = vld [vmem:[%s23] sm:$0x1]
    %v661 = vperm.slane %v659, 0
    %v667 = vunpack.c.l.b16 %v655
    %v668 = vunpack.c.l.b16 %v656
    %v669 = vunpack.c.l.b16 %v657
    %v670 = vunpack.c.l.b16 %v658
    %v671 = vpack.c.b16 %v668, %v667
    %v672 = vpack.c.b16 %v670, %v669
    %v676 = vsel %vm355, %v654, 0
    %678 = vmatpush.bf16.msra.mxu0 0
    %679 = vmatpush.bf16.msra.mxu0 0
    %680 = vmatpush.bf16.msra.mxu0 0
    %681 = vmatpush.bf16.msra.mxu0 0
    %682 = vmatpush.bf16.msra.mxu0 0
    %683 = vmatpush.bf16.msra.mxu0 0
    %684 = vmatpush.bf16.msra.mxu0 %v672
    %685 = vmatpush.bf16.msra.mxu0 %v671
    %686 = vmatmul.bf16.gmra.mxu0 %v676
    %v687 = vpop.f32.mrf.mxu0
    %v688 = vadd.f32 %v661, %v687
    %v689 = vpop.f32.mrf.mxu0
    %v690 = vadd.f32 %v661, %v689
    %691 = vdwg.mxu0
    %v692 = vmul.f32 %v688, %v248
    %v693 = vmul.f32 %v690, %v253
    %v694 = vtanh.pop %v692
    %v695 = vtanh.pop %v693
    %v696 = vpack.c.bf16 %v695, %v694
    %v698 = vand.u32 %v696, %v164
    %700 = vmatpush.bf16.msra.mxu0 0
    %701 = vmatpush.bf16.msra.mxu0 0
    %702 = vmatpush.bf16.msra.mxu0 0
    %703 = vmatpush.bf16.msra.mxu0 0
    %704 = vmatpush.bf16.msra.mxu0 0
    %705 = vmatpush.bf16.msra.mxu0 0
    %706 = vmatpush.bf16.msra.mxu0 0
    %707 = vmatpush.bf16.msra.mxu0 %v698
    %708 = vmatmul.bf16.gmra.mxu0 %v261
    %v709 = vpop.f32.mrf.mxu0
    %v710 = vadd.f32 0.0, %v709
    %v711 = vpop.f32.mrf.mxu0
    %712 = vdwg.mxu0
    %v713 = vmul.f32 %v710, %v184
    %v714 = vpack.c.bf16 %v713, %v713
    %v716 = vand.u32 %v714, %v199
    %718 = vmatpush.bf16.msra.mxu0 0
    %719 = vmatpush.bf16.msra.mxu0 0
    %720 = vmatpush.bf16.msra.mxu0 0
    %721 = vmatpush.bf16.msra.mxu0 0
    %722 = vmatpush.bf16.msra.mxu0 0
    %723 = vmatpush.bf16.msra.mxu0 0
    %724 = vmatpush.bf16.msra.mxu0 0
    %725 = vmatpush.bf16.msra.mxu0 %v716
    %726 = vmatmul.bf16.gmra.mxu0 %v287
    %v727 = vpop.f32.mrf.mxu0
    %v728 = vadd.f32 0.0, %v727
    %v729 = vpop.f32.mrf.mxu0
    %v730 = vadd.f32 0.0, %v729
    %731 = vdwg.mxu0
    %v732 = vmul.f32 %v728, %v147
    %v733 = vmul.f32 %v730, %v152
    %v734 = vpack.c.bf16 %v733, %v732
    %v736 = vand.u32 %v734, %v164
    %738 = vmatpush.bf16.msra.mxu0 0
    %739 = vmatpush.bf16.msra.mxu0 0
    %740 = vmatpush.bf16.msra.mxu0 0
    %741 = vmatpush.bf16.msra.mxu0 0
    %742 = vmatpush.bf16.msra.mxu0 0
    %743 = vmatpush.bf16.msra.mxu0 0
    %744 = vmatpush.bf16.msra.mxu0 0
    %745 = vmatpush.bf16.msra.mxu0 %v736
    %746 = vmatmul.bf16.gmra.mxu0 %v315
    %v747 = vpop.f32.mrf.mxu0
    %v748 = vadd.f32 0.0, %v747
    %v749 = vpop.f32.mrf.mxu0
    %v750 = vadd.f32 0.0, %v749
    %751 = vdwg.mxu0
    %v752 = vpack.c.bf16 %v750, %v748
    %v753 = vld [vmem:[%s16] sm:$0xf]
    %v754 = vld [vmem:[%s16 + $0x4] sm:$0xf]
    %v755 = vld [vmem:[%s16 + $0x8] sm:$0xf]
    %v756 = vld [vmem:[%s16 + $0xc] sm:$0xf]
    %v757 = vld [vmem:[%s24] sm:$0x1]
    %v759 = vperm.slane %v757, 0
    %v765 = vunpack.c.l.b16 %v753
    %v766 = vunpack.c.l.b16 %v754
    %v767 = vunpack.c.l.b16 %v755
    %v768 = vunpack.c.l.b16 %v756
    %v769 = vpack.c.b16 %v766, %v765
    %v770 = vpack.c.b16 %v768, %v767
    %v774 = vsel %vm355, %v752, 0
    %776 = vmatpush.bf16.msra.mxu0 0
    %777 = vmatpush.bf16.msra.mxu0 0
    %778 = vmatpush.bf16.msra.mxu0 0
    %779 = vmatpush.bf16.msra.mxu0 0
    %780 = vmatpush.bf16.msra.mxu0 0
    %781 = vmatpush.bf16.msra.mxu0 0
    %782 = vmatpush.bf16.msra.mxu0 %v770
    %783 = vmatpush.bf16.msra.mxu0 %v769
    %784 = vmatmul.bf16.gmra.mxu0 %v774
    %v785 = vpop.f32.mrf.mxu0
    %v786 = vadd.f32 %v759, %v785
    %v787 = vpop.f32.mrf.mxu0
    %v788 = vadd.f32 %v759, %v787
    %789 = vdwg.mxu0
    %v790 = vmul.f32 %v786, %v376
    %v791 = vmul.f32 %v788, %v381
    %v792 = vtanh.pop %v790
    %v793 = vtanh.pop %v791
    %796 = vrot.lane.b32.xlu0 %v792, 64
    %v797 = vpop.permute.xlu0 %796
    %798 = vrot.lane.b32.xlu0 %v793, 64
    %v799 = vpop.permute.xlu0 %798
    %vm802 = vcmask 785920
    %803 = vst.msk [vmem:[#allocation5] sm:$0xff] %vm802, %v797
    %vm804 = vcmask 782848
    %805 = vst.msk [vmem:[#allocation5 + $0x8] sm:$0x1f] %vm804, %v799
    %v806 = vpack.c.bf16 %v793, %v792
    %v808 = vand.u32 %v806, %v126
    %810 = vmatpush.bf16.msra.mxu0 0
    %811 = vmatpush.bf16.msra.mxu0 0
    %812 = vmatpush.bf16.msra.mxu0 0
    %813 = vmatpush.bf16.msra.mxu0 0
    %814 = vmatpush.bf16.msra.mxu0 0
    %815 = vmatpush.bf16.msra.mxu0 0
    %816 = vmatpush.bf16.msra.mxu0 0
    %817 = vmatpush.bf16.msra.mxu0 %v808
    %818 = vmatmul.bf16.gmra.mxu0 %v121
    %v819 = vpop.f32.mrf.mxu0
    %v820 = vadd.f32 0.0, %v819
    %v821 = vpop.f32.mrf.mxu0
    %v822 = vadd.f32 0.0, %v821
    %823 = vdwg.mxu0
    %v824 = vmul.f32 %v820, %v147
    %v825 = vmul.f32 %v822, %v152
    %v826 = vpack.c.bf16 %v825, %v824
    %v828 = vand.u32 %v826, %v164
    %830 = vmatpush.bf16.msra.mxu0 0
    %831 = vmatpush.bf16.msra.mxu0 0
    %832 = vmatpush.bf16.msra.mxu0 0
    %833 = vmatpush.bf16.msra.mxu0 0
    %834 = vmatpush.bf16.msra.mxu0 0
    %835 = vmatpush.bf16.msra.mxu0 0
    %836 = vmatpush.bf16.msra.mxu0 0
    %837 = vmatpush.bf16.msra.mxu0 %v828
    %838 = vmatmul.bf16.gmra.mxu0 %v159
    %v839 = vpop.f32.mrf.mxu0
    %v840 = vadd.f32 0.0, %v839
    %v841 = vpop.f32.mrf.mxu0
    %842 = vdwg.mxu0
    %v843 = vmul.f32 %v840, %v184
    %v844 = vpack.c.bf16 %v843, %v843
    %v846 = vand.u32 %v844, %v199
    %848 = vmatpush.bf16.msra.mxu0 0
    %849 = vmatpush.bf16.msra.mxu0 0
    %850 = vmatpush.bf16.msra.mxu0 0
    %851 = vmatpush.bf16.msra.mxu0 0
    %852 = vmatpush.bf16.msra.mxu0 0
    %853 = vmatpush.bf16.msra.mxu0 0
    %854 = vmatpush.bf16.msra.mxu0 0
    %855 = vmatpush.bf16.msra.mxu0 %v846
    %856 = vmatmul.bf16.gmra.mxu0 %v195
    %v857 = vpop.f32.mrf.mxu0
    %v858 = vadd.f32 0.0, %v857
    %v859 = vpop.f32.mrf.mxu0
    %v860 = vadd.f32 0.0, %v859
    %861 = vdwg.mxu0
    %v862 = vpack.c.bf16 %v860, %v858
    %v863 = vld [vmem:[%s17] sm:$0xf]
    %v864 = vld [vmem:[%s17 + $0x4] sm:$0xf]
    %v865 = vld [vmem:[%s17 + $0x8] sm:$0xf]
    %v866 = vld [vmem:[%s17 + $0xc] sm:$0xf]
    %v867 = vld [vmem:[#allocation3] sm:$0x1]
    %v869 = vperm.slane %v867, 0
    %v875 = vunpack.c.l.b16 %v863
    %v876 = vunpack.c.l.b16 %v864
    %v877 = vunpack.c.l.b16 %v865
    %v878 = vunpack.c.l.b16 %v866
    %v879 = vpack.c.b16 %v876, %v875
    %v880 = vpack.c.b16 %v878, %v877
    %v884 = vsel %vm355, %v862, 0
    %886 = vmatpush.bf16.msra.mxu0 0
    %887 = vmatpush.bf16.msra.mxu0 0
    %888 = vmatpush.bf16.msra.mxu0 0
    %889 = vmatpush.bf16.msra.mxu0 0
    %890 = vmatpush.bf16.msra.mxu0 0
    %891 = vmatpush.bf16.msra.mxu0 0
    %892 = vmatpush.bf16.msra.mxu0 %v880
    %893 = vmatpush.bf16.msra.mxu0 %v879
    %894 = vmatmul.bf16.gmra.mxu0 %v884
    %v895 = vpop.f32.mrf.mxu0
    %v896 = vadd.f32 %v869, %v895
    %v897 = vpop.f32.mrf.mxu0
    %v898 = vadd.f32 %v869, %v897
    %899 = vdwg.mxu0
    %v900 = vmul.f32 %v896, %v109
    %v901 = vmul.f32 %v898, %v110
    %v902 = vtanh.pop %v900
    %v903 = vtanh.pop %v901
    %v904 = vpack.c.bf16 %v903, %v902
    %v906 = vand.u32 %v904, %v164
    %908 = vmatpush.bf16.msra.mxu0 0
    %909 = vmatpush.bf16.msra.mxu0 0
    %910 = vmatpush.bf16.msra.mxu0 0
    %911 = vmatpush.bf16.msra.mxu0 0
    %912 = vmatpush.bf16.msra.mxu0 0
    %913 = vmatpush.bf16.msra.mxu0 0
    %914 = vmatpush.bf16.msra.mxu0 0
    %915 = vmatpush.bf16.msra.mxu0 %v906
    %916 = vmatmul.bf16.gmra.mxu0 %v261
    %v917 = vpop.f32.mrf.mxu0
    %v918 = vadd.f32 0.0, %v917
    %v919 = vpop.f32.mrf.mxu0
    %920 = vdwg.mxu0
    %v921 = vmul.f32 %v918, %v106
    %v922 = vpack.c.bf16 %v921, %v921
    %v924 = vand.u32 %v922, %v199
    %926 = vmatpush.bf16.msra.mxu0 0
    %927 = vmatpush.bf16.msra.mxu0 0
    %928 = vmatpush.bf16.msra.mxu0 0
    %929 = vmatpush.bf16.msra.mxu0 0
    %930 = vmatpush.bf16.msra.mxu0 0
    %931 = vmatpush.bf16.msra.mxu0 0
    %932 = vmatpush.bf16.msra.mxu0 0
    %933 = vmatpush.bf16.msra.mxu0 %v924
    %934 = vmatmul.bf16.gmra.mxu0 %v287
    %v935 = vpop.f32.mrf.mxu0
    %v936 = vadd.f32 0.0, %v935
    %v937 = vpop.f32.mrf.mxu0
    %v938 = vadd.f32 0.0, %v937
    %939 = vdwg.mxu0
    %v940 = vmul.f32 %v936, %v104
    %v941 = vmul.f32 %v938, %v105
    %v942 = vpack.c.bf16 %v941, %v940
    %v944 = vand.u32 %v942, %v164
    %946 = vmatpush.bf16.msra.mxu0 0
    %947 = vmatpush.bf16.msra.mxu0 0
    %948 = vmatpush.bf16.msra.mxu0 0
    %949 = vmatpush.bf16.msra.mxu0 0
    %950 = vmatpush.bf16.msra.mxu0 0
    %951 = vmatpush.bf16.msra.mxu0 0
    %952 = vmatpush.bf16.msra.mxu0 0
    %953 = vmatpush.bf16.msra.mxu0 %v944
    %954 = vmatmul.bf16.gmra.mxu0 %v315
    %v955 = vpop.f32.mrf.mxu0
    %v956 = vadd.f32 0.0, %v955
    %v957 = vpop.f32.mrf.mxu0
    %v958 = vadd.f32 0.0, %v957
    %959 = vdwg.mxu0
    %v960 = vpack.c.bf16 %v958, %v956
    %v961 = vld [vmem:[#allocation2] sm:$0x1]
    %v962 = vld [vmem:[#allocation4] sm:$0x1]
    %v964 = vperm.slane %v962, 0
    %vm966 = vcmask 7168
    %v968 = vsel %vm966, %v960, 0
    %vm970 = vcmask 1040384
    %v971 = vsel 0, 4294967295, 65535
    %v972 = vsel %vm970, %v971, 0
    %v974 = vand.u32 %v961, %v972
    %976 = vmatpush.bf16.msra.mxu0 0
    %977 = vmatpush.bf16.msra.mxu0 0
    %978 = vmatpush.bf16.msra.mxu0 0
    %979 = vmatpush.bf16.msra.mxu0 0
    %980 = vmatpush.bf16.msra.mxu0 0
    %981 = vmatpush.bf16.msra.mxu0 0
    %982 = vmatpush.bf16.msra.mxu0 0
    %983 = vmatpush.bf16.msra.mxu0 %v974
    %984 = vmatmul.bf16.gmra.mxu0 %v968
    %v985 = vpop.f32.mrf.mxu0
    %v986 = vadd.f32 %v964, %v985
    %v987 = vpop.f32.mrf.mxu0
    %v988 = vadd.f32 %v964, %v987
    %989 = vdwg.mxu0
    %v990 = vmul.f32 %v986, %v107
    %v991 = vmul.f32 %v988, %v108
    %v992 = vtanh.pop %v990
    %v993 = vtanh.pop %v991
    %996 = vrot.lane.b32.xlu0 %v992, 96
    %v997 = vpop.permute.xlu0 %996
    %998 = vrot.lane.b32.xlu0 %v993, 96
    %v999 = vpop.permute.xlu0 %998
    %vm1002 = vcmask 794368
    %1003 = vst.msk [vmem:[#allocation5] sm:$0xff] %vm1002, %v997
    %vm1004 = vcmask 791296
    %1005 = vst.msk [vmem:[#allocation5 + $0x8] sm:$0x1f] %vm1004, %v999
    // Predicated region
    $region110: #{tpu_custom_call.1} parent=1 // pred_check
      _
    $region111: #{tpu_custom_call.1} parent=1 // pred_check_branch
      %1007 = sbr.rel (0) target = $region113
    $region112: #{tpu_custom_call.1} parent=1 // pred_region
      %1009 = vsyncadd [#allocation6], 0
      %s1010 = sshll.u32 [#allocation5], 4
      %s1011 = int_to_ptr.vmem [resolvable:$true] %s1010
      %s1012 = sshll.u32 %s27, 4
      %s1013 = int_to_ptr.hbm [resolvable:$true] %s1012
      %1018 = dma.vmem_to_hbm [thread:$0]  %s1011, 256, %s1013, [#allocation6], 128, 128, 8
    $region113: #{tpu_custom_call.1} parent=1 // pred_fallthru
      _
    // Predicated region
    $region114: #{tpu_custom_call.1} parent=1 // pred_check
      _
    $region115: #{tpu_custom_call.1} parent=1 // pred_check_branch
      %1020 = sbr.rel (0) target = $region117
    $region116: #{tpu_custom_call.1} parent=1 // pred_region
      %1022 = dma.done [#allocation6], 256
    $region117: #{tpu_custom_call.1} parent=1 // pred_fallthru
      _
    %1023 = vsyncpa [#allocation6], 1

</llo_original>
